<compile_context>
chip_gen: v7x
topology: tpu7x:2x2x1
jax: 0.10.0
libtpu: 0.0.40
codegen_flags: <defaults>
</compile_context>

<pallas_src>
import numpy as np
import jax
import jax.numpy as jnp
from jax import lax
from jax.experimental import pallas as pl
from jax.experimental.pallas import tpu as pltpu

# ---- small, module-consistent sizes --------------------------------------
B, H, D = 2, 8, 16        # batch, horizon, observation_dim  (H*D = 128 lanes)
A_DIM = 4                 # action_dim (inv_model exists but is unused in forward)
HIDDEN = 32               # hidden_dim of the synthetic denoiser
T_EMB = 16                # time-embedding width
N_T = 8                   # n_timesteps (module default 1000; small for demo)
HIST = 1                  # history_length
HD = H * D                # 128  -> lane-dense state width
HHID = H * HIDDEN         # 256  -> lane-dense hidden width


# ---- diffusion schedule (cosine_beta_schedule, same math as the module) ---
def cosine_beta_schedule(timesteps, s=0.008):
    steps = timesteps + 1
    x = np.linspace(0, steps, steps, dtype=np.float64)
    ac = np.cos(((x / steps) + s) / (1 + s) * np.pi * 0.5) ** 2
    ac = ac / ac[0]
    betas = 1.0 - (ac[1:] / ac[:-1])
    return np.clip(betas, 0.0, 0.999)


def make_diffusion_coefs(n_timesteps):
    """Raw per-t buffers (float64), matching the torch register_buffer math."""
    betas = cosine_beta_schedule(n_timesteps)
    alphas = 1.0 - betas
    ac = np.cumprod(alphas)
    ac_prev = np.concatenate([np.ones(1), ac[:-1]])
    post_var = betas * (1.0 - ac_prev) / (1.0 - ac)
    coefs = np.zeros((n_timesteps, 5), dtype=np.float64)
    coefs[:, 0] = np.sqrt(1.0 / ac)                               # sqrt_recip_alphas_cumprod
    coefs[:, 1] = np.sqrt(1.0 / ac - 1.0)                         # sqrt_recipm1_alphas_cumprod
    coefs[:, 2] = betas * np.sqrt(ac_prev) / (1.0 - ac)           # posterior_mean_coef1
    coefs[:, 3] = (1.0 - ac_prev) * np.sqrt(alphas) / (1.0 - ac)  # posterior_mean_coef2
    coefs[:, 4] = np.log(np.clip(post_var, 1e-20, None))          # posterior_log_variance_clipped
    return coefs


def fold_coefs(coefs64):
    """Fold predict_start_from_noise + q_posterior + p_sample into 3 per-t scalars.

    x_new = a[t]*x + b[t]*eps + c[t]*noise     (clip_denoised=False only)
      a = pc1*src + pc2, b = -pc1*srm1, c = 1[t>0] * 0.5 * exp(0.5*plog)
    Folded in float64 (production-N_T parity), returned as a FLAT (3*N_T,)
    float32 table (1-D SMEM avoids the (8,128)-word 2-D SMEM padding).
    """
    src, srm1, pc1, pc2, plog = coefs64.T
    a = pc1 * src + pc2
    b = -pc1 * srm1
    t = np.arange(coefs64.shape[0])
    c = np.where(t == 0, 0.0, 1.0) * 0.5 * np.exp(0.5 * plog)
    return jnp.asarray(np.concatenate([a, b, c]), dtype=jnp.float32)


def sinusoidal_time_emb(n_timesteps, dim):
    half = dim // 2
    freqs = np.exp(-np.log(10000.0) * np.arange(half) / max(half - 1, 1))
    t = np.arange(n_timesteps)[:, None].astype(np.float64)
    emb = np.concatenate([np.sin(t * freqs), np.cos(t * freqs)], axis=-1)
    return jnp.asarray(emb[:, None, :], dtype=jnp.float32)   # (T, 1, dim)


# ---- Pallas kernel: one grid step == one batch-group's FULL reverse loop ---
def _p_sample_loop_kernel(x0_ref, noise_ref, tproj_ref, coef_ref,
                          w1_ref, w2_ref, b2_ref, out_ref):
    # Time-invariant values (loaded once, live in vregs/VMEM across the loop).
    w1 = w1_ref[...]                                   # (HD, HHID) block-diag kron(I_H, W1)
    w2 = w2_ref[...]                                   # (HHID, HD) block-diag kron(I_H, W2)
    b2 = b2_ref[...]                                   # (1, HD)   b2 tiled per token
    x0 = x0_ref[...]                                   # (B_blk, HD), already history-covered
    # history_cover mask in the flattened (H*D,) lane layout: lane = h*D + d.
    lane = lax.broadcasted_iota(jnp.int32, x0.shape, 1)
    hmask = lane < HIST * D                            # history lanes of the carry

    def body(i, x):
        t = N_T - 1 - i                                # reversed(range(n_timesteps))
        # --- synthetic denoiser model(x, t): per-token MLP via lane-dense matmuls ---
        h = jnp.tanh(jnp.dot(x, w1, preferred_element_type=jnp.float32)
                     + tproj_ref[pl.ds(t, 1), :])      # (B_blk, HHID)
        eps = jnp.dot(h, w2, preferred_element_type=jnp.float32) + b2   # (B_blk, HD)
        # --- folded p_mean_variance + p_sample: x_new = a*x + b*eps + c*noise ---
        a = coef_ref[t]
        b = coef_ref[N_T + t]
        c = coef_ref[2 * N_T + t]
        nz = noise_ref[i]                              # (B_blk, HD) plain leading-axis load
        x_new = a * x + b * eps + c * nz
        # --- history_cover(x, history, 0, HIST): history lanes of the carry are invariant ---
        return jnp.where(hmask, x, x_new)

    # TODO(synk): production N_T=1000 -> partial unroll + chunked/streamed noise
    # (or in-kernel pltpu.prng_* which changes the random stream vs jax.random).
    out_ref[...] = lax.fori_loop(0, N_T, body, x0, unroll=True)   # one dense 128-lane store


def gaussian_inv_dyn_diffusion_forward(obs_history, params, sample_key, batch_grid=None):
    """forward(*args) -> conditional_sample(obs_history) -> p_sample_loop."""
    if batch_grid is None:
        try:
            kind = jax.devices()[0].device_kind.lower()
        except Exception:
            kind = ""
        # 2 TensorCores per chip (v7x): keep batch as the parallel grid axis.
        # Single-TC chips (v5e/v6e): collapse batch into one program's sublanes.
        batch_grid = ("v7" in kind) or ("7x" in kind)
    G, B_blk = (B, 1) if batch_grid else (1, B)

    hist = obs_history[:, :HIST, :].astype(jnp.float32)            # (B, HIST, D)
    k0, k1 = jax.random.split(sample_key)
    x0 = 0.5 * jax.random.normal(k0, (B, H, D), jnp.float32)       # x = 0.5*randn(shape)
    x0 = x0.at[:, :HIST, :].set(hist)                              # initial history_cover

    # Per-step noise generated directly in the kernel layout (no XLA transpose).
    if batch_grid:
        noise = jax.random.normal(k1, (B, N_T, H, D), jnp.float32)
        noise_k = noise.reshape(G, N_T, B_blk, HD)                 # (B, N_T, 1, 128)
        noise_bt = noise                                           # (B, N_T, H, D) for reference
    else:
        noise = jax.random.normal(k1, (N_T, B, H, D), jnp.float32)
        noise_k = noise.reshape(G, N_T, B_blk, HD)                 # (1, N_T, B, 128)
        noise_bt = jnp.transpose(noise, (1, 0, 2, 3))              # reference-only view

    # --- x-independent precomputes (hoisted out of the kernel's time loop) ---
    # TODO(synk): for production model sizes store these weights in bfloat16.
    w1_bd = jnp.kron(jnp.eye(H, dtype=jnp.float32), params["w1"])  # (HD, HHID) block-diag
    w2_bd = jnp.kron(jnp.eye(H, dtype=jnp.float32), params["w2"])  # (HHID, HD) block-diag
    b2_t = jnp.tile(params["b2"], (1, H))                          # (1, HD)
    tproj = params["temb"][:, 0, :] @ params["wt"] + params["b1"]  # (N_T, HIDDEN)
    tproj_t = jnp.tile(tproj, (1, H))                              # (N_T, HHID) per-token tiled
    coefs_folded = fold_coefs(params["coefs64"])                   # flat (3*N_T,), SMEM
    x0_k = x0.reshape(G, B_blk, HD)

    out = pl.pallas_call(
        _p_sample_loop_kernel,
        out_shape=jax.ShapeDtypeStruct((G, B_blk, HD), jnp.float32),
        grid=(G,),
        in_specs=[
            pl.BlockSpec((None, B_blk, HD), lambda g: (g, 0, 0)),           # x0 (history-covered)
            pl.BlockSpec((None, N_T, B_blk, HD), lambda g: (g, 0, 0, 0)),   # per-step noise
            pl.BlockSpec((N_T, HHID), lambda g: (0, 0)),                    # t-projection table
            pl.BlockSpec(memory_space=pltpu.SMEM),                          # folded coefs (3*N_T,)
            pl.BlockSpec((HD, HHID), lambda g: (0, 0)),                     # W1 block-diag
            pl.BlockSpec((HHID, HD), lambda g: (0, 0)),                     # W2 block-diag
            pl.BlockSpec((1, HD), lambda g: (0, 0)),                        # b2 tiled
        ],
        out_specs=pl.BlockSpec((None, B_blk, HD), lambda g: (g, 0, 0)),
        compiler_params=pltpu.CompilerParams(dimension_semantics=("parallel",)),
    )(x0_k, noise_k, tproj_t, coefs_folded, w1_bd, w2_bd, b2_t)
    return out.reshape(B, H, D), (x0, noise_bt)


# ---- pure-JAX reference of the same forward pass (original, unfolded math) --
def reference_forward(x0, hist, noise_bt, params):
    coefs = jnp.asarray(params["coefs64"], dtype=jnp.float32)
    temb = params["temb"]
    w1, wt, b1, w2, b2 = (params["w1"], params["wt"], params["b1"],
                          params["w2"], params["b2"])
    x = x0
    for i in range(N_T):
        t = N_T - 1 - i
        xf = x.reshape(B * H, D)
        tproj = temb[t] @ wt
        h = jnp.tanh(xf @ w1 + tproj + b1)
        eps = h @ w2 + b2
        src, srm1, pc1, pc2, plog = (coefs[t, 0], coefs[t, 1], coefs[t, 2],
                                     coefs[t, 3], coefs[t, 4])
        x_recon = src * xf - srm1 * eps               # predict_start_from_noise
        mean = pc1 * x_recon + pc2 * xf               # q_posterior mean
        nz = 0.0 if t == 0 else 1.0
        x_new = mean + nz * jnp.exp(0.5 * plog) * (0.5 * noise_bt[:, i].reshape(B * H, D))
        x = x_new.reshape(B, H, D)
        x = x.at[:, :HIST, :].set(hist)               # history_cover
    return x


if __name__ == "__main__":
    key = jax.random.PRNGKey(0)
    k_obs, k_w1, k_wt, k_w2, k_samp = jax.random.split(key, 5)

    # obs_history: (batch, history_length, observation_dim)
    obs_history = jax.random.normal(k_obs, (B, HIST, D), jnp.float32)

    # deterministic synthetic-denoiser parameters + diffusion buffers
    # TODO(synk): inv_model (Linear/Tanh stack) is not exercised by forward(); omitted.
    params = dict(
        coefs64=make_diffusion_coefs(N_T),
        temb=sinusoidal_time_emb(N_T, T_EMB),
        w1=jax.random.normal(k_w1, (D, HIDDEN), jnp.float32) / np.sqrt(D),
        wt=jax.random.normal(k_wt, (T_EMB, HIDDEN), jnp.float32) / np.sqrt(T_EMB),
        b1=jnp.zeros((1, HIDDEN), jnp.float32),
        w2=jax.random.normal(k_w2, (HIDDEN, D), jnp.float32) / np.sqrt(HIDDEN),
        b2=jnp.zeros((1, D), jnp.float32),
    )

    out, (x0, noise_bt) = gaussian_inv_dyn_diffusion_forward(obs_history, params, k_samp)
    out = jax.block_until_ready(out)

    ref = reference_forward(x0, obs_history[:, :HIST, :], noise_bt, params)
    assert out.shape == (B, H, D) and out.dtype == jnp.float32
    np.testing.assert_allclose(np.asarray(out), np.asarray(ref), rtol=2e-3, atol=2e-3)
    print("KERNEL_OK")
</pallas_src>

<mosaic_0001>
module attributes {stable_mosaic.version = 11 : i64} {
  func.func @_p_sample_loop_kernel(%arg0: i32, %arg1: memref<1x2x128xf32, #tpu.memory_space<vmem>>, %arg2: memref<1x8x2x128xf32, #tpu.memory_space<vmem>>, %arg3: memref<8x256xf32, #tpu.memory_space<vmem>>, %arg4: memref<24xf32, #tpu.memory_space<smem>>, %arg5: memref<128x256xf32, #tpu.memory_space<vmem>>, %arg6: memref<256x128xf32, #tpu.memory_space<vmem>>, %arg7: memref<1x128xf32, #tpu.memory_space<vmem>>, %arg8: memref<1x2x128xf32, #tpu.memory_space<vmem>>) attributes {dimension_semantics = [#tpu.dimension_semantics<parallel>], iteration_bounds = array<i64: 1>, scalar_prefetch = 0 : i64, scratch_operands = 0 : i64, tpu.core_type = #tpu.core_type<tc>, window_params = [{transform_indices = @transform_0, window_bounds = array<i64: 1, 2, 128>}, {transform_indices = @transform_1, window_bounds = array<i64: 1, 8, 2, 128>}, {pipeline_mode = #tpu.pipeline_mode<synchronous>, transform_indices = @transform_2, window_bounds = array<i64: 8, 256>}, {transform_indices = @transform_3, window_bounds = array<i64: 24>}, {pipeline_mode = #tpu.pipeline_mode<synchronous>, transform_indices = @transform_4, window_bounds = array<i64: 128, 256>}, {pipeline_mode = #tpu.pipeline_mode<synchronous>, transform_indices = @transform_5, window_bounds = array<i64: 256, 128>}, {pipeline_mode = #tpu.pipeline_mode<synchronous>, transform_indices = @transform_6, window_bounds = array<i64: 1, 128>}, {transform_indices = @transform_7, window_bounds = array<i64: 1, 2, 128>}]} {
    %c0 = arith.constant 0 : index
    %c0_0 = arith.constant 0 : index
    %0 = vector.load %arg5[%c0, %c0_0] : memref<128x256xf32, #tpu.memory_space<vmem>>, vector<128x256xf32>
    %c0_1 = arith.constant 0 : index
    %c0_2 = arith.constant 0 : index
    %1 = vector.load %arg6[%c0_1, %c0_2] : memref<256x128xf32, #tpu.memory_space<vmem>>, vector<256x128xf32>
    %c0_3 = arith.constant 0 : index
    %c0_4 = arith.constant 0 : index
    %2 = vector.load %arg7[%c0_3, %c0_4] : memref<1x128xf32, #tpu.memory_space<vmem>>, vector<1x128xf32>
    %c0_5 = arith.constant 0 : index
    %c0_6 = arith.constant 0 : index
    %c0_7 = arith.constant 0 : index
    %3 = vector.load %arg1[%c0_5, %c0_6, %c0_7] : memref<1x2x128xf32, #tpu.memory_space<vmem>>, vector<1x2x128xf32>
    %4 = vector.shape_cast %3 : vector<1x2x128xf32> to vector<2x128xf32>
    %5 = tpu.iota {dimensions = array<i32: 1>} : vector<2x128xi32>
    %c16_i32 = arith.constant 16 : i32
    %6 = vector.broadcast %c16_i32 : i32 to vector<2x128xi32>
    %7 = arith.cmpi slt, %5, %6 : vector<2x128xi32>
    %c0_i32 = arith.constant 0 : i32
    %c7_i32 = arith.constant 7 : i32
    %8 = arith.subi %c7_i32, %c0_i32 : i32
    %cst = arith.constant dense<0.000000e+00> : vector<2x256xf32>
    %9 = tpu.matmul %4, %0, %cst {dimension_numbers = #tpu.dot_dimension_numbers<[1], [0], [0], [1], [0, 0, 1, 1], [], []>} : vector<2x128xf32>, vector<128x256xf32>, vector<2x256xf32> -> vector<2x256xf32>
    %10 = arith.index_cast %8 : i32 to index
    %c0_8 = arith.constant 0 : index
    %11 = vector.load %arg3[%10, %c0_8] : memref<8x256xf32, #tpu.memory_space<vmem>>, vector<1x256xf32>
    %12 = vector.broadcast %11 : vector<1x256xf32> to vector<2x256xf32>
    %13 = arith.addf %9, %12 : vector<2x256xf32>
    %14 = math.tanh %13 : vector<2x256xf32>
    %cst_9 = arith.constant dense<0.000000e+00> : vector<2x128xf32>
    %15 = tpu.matmul %14, %1, %cst_9 {dimension_numbers = #tpu.dot_dimension_numbers<[1], [0], [0], [1], [0, 0, 1, 1], [], []>} : vector<2x256xf32>, vector<256x128xf32>, vector<2x128xf32> -> vector<2x128xf32>
    %16 = vector.broadcast %2 : vector<1x128xf32> to vector<2x128xf32>
    %17 = arith.addf %15, %16 : vector<2x128xf32>
    %18 = arith.index_cast %8 : i32 to index
    %19 = memref.load %arg4[%18] : memref<24xf32, #tpu.memory_space<smem>>
    %c8_i32 = arith.constant 8 : i32
    %20 = arith.addi %c8_i32, %8 : i32
    %21 = arith.index_cast %20 : i32 to index
    %22 = memref.load %arg4[%21] : memref<24xf32, #tpu.memory_space<smem>>
    %c16_i32_10 = arith.constant 16 : i32
    %23 = arith.addi %c16_i32_10, %8 : i32
    %24 = arith.index_cast %23 : i32 to index
    %25 = memref.load %arg4[%24] : memref<24xf32, #tpu.memory_space<smem>>
    %c0_11 = arith.constant 0 : index
    %26 = arith.index_cast %c0_i32 : i32 to index
    %c0_12 = arith.constant 0 : index
    %c0_13 = arith.constant 0 : index
    %27 = vector.load %arg2[%c0_11, %26, %c0_12, %c0_13] : memref<1x8x2x128xf32, #tpu.memory_space<vmem>>, vector<1x1x2x128xf32>
    %28 = vector.shape_cast %27 : vector<1x1x2x128xf32> to vector<2x128xf32>
    %29 = vector.broadcast %19 : f32 to vector<2x128xf32>
    %30 = arith.mulf %29, %4 : vector<2x128xf32>
    %31 = vector.broadcast %22 : f32 to vector<2x128xf32>
    %32 = arith.mulf %31, %17 : vector<2x128xf32>
    %33 = arith.addf %30, %32 : vector<2x128xf32>
    %34 = vector.broadcast %25 : f32 to vector<2x128xf32>
    %35 = arith.mulf %34, %28 : vector<2x128xf32>
    %36 = arith.addf %33, %35 : vector<2x128xf32>
    %37 = arith.select %7, %4, %36 : vector<2x128xi1>, vector<2x128xf32>
    %c1_i32 = arith.constant 1 : i32
    %c7_i32_14 = arith.constant 7 : i32
    %38 = arith.subi %c7_i32_14, %c1_i32 : i32
    %cst_15 = arith.constant dense<0.000000e+00> : vector<2x256xf32>
    %39 = tpu.matmul %37, %0, %cst_15 {dimension_numbers = #tpu.dot_dimension_numbers<[1], [0], [0], [1], [0, 0, 1, 1], [], []>} : vector<2x128xf32>, vector<128x256xf32>, vector<2x256xf32> -> vector<2x256xf32>
    %40 = arith.index_cast %38 : i32 to index
    %c0_16 = arith.constant 0 : index
    %41 = vector.load %arg3[%40, %c0_16] : memref<8x256xf32, #tpu.memory_space<vmem>>, vector<1x256xf32>
    %42 = vector.broadcast %41 : vector<1x256xf32> to vector<2x256xf32>
    %43 = arith.addf %39, %42 : vector<2x256xf32>
    %44 = math.tanh %43 : vector<2x256xf32>
    %cst_17 = arith.constant dense<0.000000e+00> : vector<2x128xf32>
    %45 = tpu.matmul %44, %1, %cst_17 {dimension_numbers = #tpu.dot_dimension_numbers<[1], [0], [0], [1], [0, 0, 1, 1], [], []>} : vector<2x256xf32>, vector<256x128xf32>, vector<2x128xf32> -> vector<2x128xf32>
    %46 = vector.broadcast %2 : vector<1x128xf32> to vector<2x128xf32>
    %47 = arith.addf %45, %46 : vector<2x128xf32>
    %48 = arith.index_cast %38 : i32 to index
    %49 = memref.load %arg4[%48] : memref<24xf32, #tpu.memory_space<smem>>
    %c8_i32_18 = arith.constant 8 : i32
    %50 = arith.addi %c8_i32_18, %38 : i32
    %51 = arith.index_cast %50 : i32 to index
    %52 = memref.load %arg4[%51] : memref<24xf32, #tpu.memory_space<smem>>
    %c16_i32_19 = arith.constant 16 : i32
    %53 = arith.addi %c16_i32_19, %38 : i32
    %54 = arith.index_cast %53 : i32 to index
    %55 = memref.load %arg4[%54] : memref<24xf32, #tpu.memory_space<smem>>
    %c0_20 = arith.constant 0 : index
    %56 = arith.index_cast %c1_i32 : i32 to index
    %c0_21 = arith.constant 0 : index
    %c0_22 = arith.constant 0 : index
    %57 = vector.load %arg2[%c0_20, %56, %c0_21, %c0_22] : memref<1x8x2x128xf32, #tpu.memory_space<vmem>>, vector<1x1x2x128xf32>
    %58 = vector.shape_cast %57 : vector<1x1x2x128xf32> to vector<2x128xf32>
    %59 = vector.broadcast %49 : f32 to vector<2x128xf32>
    %60 = arith.mulf %59, %37 : vector<2x128xf32>
    %61 = vector.broadcast %52 : f32 to vector<2x128xf32>
    %62 = arith.mulf %61, %47 : vector<2x128xf32>
    %63 = arith.addf %60, %62 : vector<2x128xf32>
    %64 = vector.broadcast %55 : f32 to vector<2x128xf32>
    %65 = arith.mulf %64, %58 : vector<2x128xf32>
    %66 = arith.addf %63, %65 : vector<2x128xf32>
    %67 = arith.select %7, %37, %66 : vector<2x128xi1>, vector<2x128xf32>
    %c2_i32 = arith.constant 2 : i32
    %c7_i32_23 = arith.constant 7 : i32
    %68 = arith.subi %c7_i32_23, %c2_i32 : i32
    %cst_24 = arith.constant dense<0.000000e+00> : vector<2x256xf32>
    %69 = tpu.matmul %67, %0, %cst_24 {dimension_numbers = #tpu.dot_dimension_numbers<[1], [0], [0], [1], [0, 0, 1, 1], [], []>} : vector<2x128xf32>, vector<128x256xf32>, vector<2x256xf32> -> vector<2x256xf32>
    %70 = arith.index_cast %68 : i32 to index
    %c0_25 = arith.constant 0 : index
    %71 = vector.load %arg3[%70, %c0_25] : memref<8x256xf32, #tpu.memory_space<vmem>>, vector<1x256xf32>
    %72 = vector.broadcast %71 : vector<1x256xf32> to vector<2x256xf32>
    %73 = arith.addf %69, %72 : vector<2x256xf32>
    %74 = math.tanh %73 : vector<2x256xf32>
    %cst_26 = arith.constant dense<0.000000e+00> : vector<2x128xf32>
    %75 = tpu.matmul %74, %1, %cst_26 {dimension_numbers = #tpu.dot_dimension_numbers<[1], [0], [0], [1], [0, 0, 1, 1], [], []>} : vector<2x256xf32>, vector<256x128xf32>, vector<2x128xf32> -> vector<2x128xf32>
    %76 = vector.broadcast %2 : vector<1x128xf32> to vector<2x128xf32>
    %77 = arith.addf %75, %76 : vector<2x128xf32>
    %78 = arith.index_cast %68 : i32 to index
    %79 = memref.load %arg4[%78] : memref<24xf32, #tpu.memory_space<smem>>
    %c8_i32_27 = arith.constant 8 : i32
    %80 = arith.addi %c8_i32_27, %68 : i32
    %81 = arith.index_cast %80 : i32 to index
    %82 = memref.load %arg4[%81] : memref<24xf32, #tpu.memory_space<smem>>
    %c16_i32_28 = arith.constant 16 : i32
    %83 = arith.addi %c16_i32_28, %68 : i32
    %84 = arith.index_cast %83 : i32 to index
    %85 = memref.load %arg4[%84] : memref<24xf32, #tpu.memory_space<smem>>
    %c0_29 = arith.constant 0 : index
    %86 = arith.index_cast %c2_i32 : i32 to index
    %c0_30 = arith.constant 0 : index
    %c0_31 = arith.constant 0 : index
    %87 = vector.load %arg2[%c0_29, %86, %c0_30, %c0_31] : memref<1x8x2x128xf32, #tpu.memory_space<vmem>>, vector<1x1x2x128xf32>
    %88 = vector.shape_cast %87 : vector<1x1x2x128xf32> to vector<2x128xf32>
    %89 = vector.broadcast %79 : f32 to vector<2x128xf32>
    %90 = arith.mulf %89, %67 : vector<2x128xf32>
    %91 = vector.broadcast %82 : f32 to vector<2x128xf32>
    %92 = arith.mulf %91, %77 : vector<2x128xf32>
    %93 = arith.addf %90, %92 : vector<2x128xf32>
    %94 = vector.broadcast %85 : f32 to vector<2x128xf32>
    %95 = arith.mulf %94, %88 : vector<2x128xf32>
    %96 = arith.addf %93, %95 : vector<2x128xf32>
    %97 = arith.select %7, %67, %96 : vector<2x128xi1>, vector<2x128xf32>
    %c3_i32 = arith.constant 3 : i32
    %c7_i32_32 = arith.constant 7 : i32
    %98 = arith.subi %c7_i32_32, %c3_i32 : i32
    %cst_33 = arith.constant dense<0.000000e+00> : vector<2x256xf32>
    %99 = tpu.matmul %97, %0, %cst_33 {dimension_numbers = #tpu.dot_dimension_numbers<[1], [0], [0], [1], [0, 0, 1, 1], [], []>} : vector<2x128xf32>, vector<128x256xf32>, vector<2x256xf32> -> vector<2x256xf32>
    %100 = arith.index_cast %98 : i32 to index
    %c0_34 = arith.constant 0 : index
    %101 = vector.load %arg3[%100, %c0_34] : memref<8x256xf32, #tpu.memory_space<vmem>>, vector<1x256xf32>
    %102 = vector.broadcast %101 : vector<1x256xf32> to vector<2x256xf32>
    %103 = arith.addf %99, %102 : vector<2x256xf32>
    %104 = math.tanh %103 : vector<2x256xf32>
    %cst_35 = arith.constant dense<0.000000e+00> : vector<2x128xf32>
    %105 = tpu.matmul %104, %1, %cst_35 {dimension_numbers = #tpu.dot_dimension_numbers<[1], [0], [0], [1], [0, 0, 1, 1], [], []>} : vector<2x256xf32>, vector<256x128xf32>, vector<2x128xf32> -> vector<2x128xf32>
    %106 = vector.broadcast %2 : vector<1x128xf32> to vector<2x128xf32>
    %107 = arith.addf %105, %106 : vector<2x128xf32>
    %108 = arith.index_cast %98 : i32 to index
    %109 = memref.load %arg4[%108] : memref<24xf32, #tpu.memory_space<smem>>
    %c8_i32_36 = arith.constant 8 : i32
    %110 = arith.addi %c8_i32_36, %98 : i32
    %111 = arith.index_cast %110 : i32 to index
    %112 = memref.load %arg4[%111] : memref<24xf32, #tpu.memory_space<smem>>
    %c16_i32_37 = arith.constant 16 : i32
    %113 = arith.addi %c16_i32_37, %98 : i32
    %114 = arith.index_cast %113 : i32 to index
    %115 = memref.load %arg4[%114] : memref<24xf32, #tpu.memory_space<smem>>
    %c0_38 = arith.constant 0 : index
    %116 = arith.index_cast %c3_i32 : i32 to index
    %c0_39 = arith.constant 0 : index
    %c0_40 = arith.constant 0 : index
    %117 = vector.load %arg2[%c0_38, %116, %c0_39, %c0_40] : memref<1x8x2x128xf32, #tpu.memory_space<vmem>>, vector<1x1x2x128xf32>
    %118 = vector.shape_cast %117 : vector<1x1x2x128xf32> to vector<2x128xf32>
    %119 = vector.broadcast %109 : f32 to vector<2x128xf32>
    %120 = arith.mulf %119, %97 : vector<2x128xf32>
    %121 = vector.broadcast %112 : f32 to vector<2x128xf32>
    %122 = arith.mulf %121, %107 : vector<2x128xf32>
    %123 = arith.addf %120, %122 : vector<2x128xf32>
    %124 = vector.broadcast %115 : f32 to vector<2x128xf32>
    %125 = arith.mulf %124, %118 : vector<2x128xf32>
    %126 = arith.addf %123, %125 : vector<2x128xf32>
    %127 = arith.select %7, %97, %126 : vector<2x128xi1>, vector<2x128xf32>
    %c4_i32 = arith.constant 4 : i32
    %c7_i32_41 = arith.constant 7 : i32
    %128 = arith.subi %c7_i32_41, %c4_i32 : i32
    %cst_42 = arith.constant dense<0.000000e+00> : vector<2x256xf32>
    %129 = tpu.matmul %127, %0, %cst_42 {dimension_numbers = #tpu.dot_dimension_numbers<[1], [0], [0], [1], [0, 0, 1, 1], [], []>} : vector<2x128xf32>, vector<128x256xf32>, vector<2x256xf32> -> vector<2x256xf32>
    %130 = arith.index_cast %128 : i32 to index
    %c0_43 = arith.constant 0 : index
    %131 = vector.load %arg3[%130, %c0_43] : memref<8x256xf32, #tpu.memory_space<vmem>>, vector<1x256xf32>
    %132 = vector.broadcast %131 : vector<1x256xf32> to vector<2x256xf32>
    %133 = arith.addf %129, %132 : vector<2x256xf32>
    %134 = math.tanh %133 : vector<2x256xf32>
    %cst_44 = arith.constant dense<0.000000e+00> : vector<2x128xf32>
    %135 = tpu.matmul %134, %1, %cst_44 {dimension_numbers = #tpu.dot_dimension_numbers<[1], [0], [0], [1], [0, 0, 1, 1], [], []>} : vector<2x256xf32>, vector<256x128xf32>, vector<2x128xf32> -> vector<2x128xf32>
    %136 = vector.broadcast %2 : vector<1x128xf32> to vector<2x128xf32>
    %137 = arith.addf %135, %136 : vector<2x128xf32>
    %138 = arith.index_cast %128 : i32 to index
    %139 = memref.load %arg4[%138] : memref<24xf32, #tpu.memory_space<smem>>
    %c8_i32_45 = arith.constant 8 : i32
    %140 = arith.addi %c8_i32_45, %128 : i32
    %141 = arith.index_cast %140 : i32 to index
    %142 = memref.load %arg4[%141] : memref<24xf32, #tpu.memory_space<smem>>
    %c16_i32_46 = arith.constant 16 : i32
    %143 = arith.addi %c16_i32_46, %128 : i32
    %144 = arith.index_cast %143 : i32 to index
    %145 = memref.load %arg4[%144] : memref<24xf32, #tpu.memory_space<smem>>
    %c0_47 = arith.constant 0 : index
    %146 = arith.index_cast %c4_i32 : i32 to index
    %c0_48 = arith.constant 0 : index
    %c0_49 = arith.constant 0 : index
    %147 = vector.load %arg2[%c0_47, %146, %c0_48, %c0_49] : memref<1x8x2x128xf32, #tpu.memory_space<vmem>>, vector<1x1x2x128xf32>
    %148 = vector.shape_cast %147 : vector<1x1x2x128xf32> to vector<2x128xf32>
    %149 = vector.broadcast %139 : f32 to vector<2x128xf32>
    %150 = arith.mulf %149, %127 : vector<2x128xf32>
    %151 = vector.broadcast %142 : f32 to vector<2x128xf32>
    %152 = arith.mulf %151, %137 : vector<2x128xf32>
    %153 = arith.addf %150, %152 : vector<2x128xf32>
    %154 = vector.broadcast %145 : f32 to vector<2x128xf32>
    %155 = arith.mulf %154, %148 : vector<2x128xf32>
    %156 = arith.addf %153, %155 : vector<2x128xf32>
    %157 = arith.select %7, %127, %156 : vector<2x128xi1>, vector<2x128xf32>
    %c5_i32 = arith.constant 5 : i32
    %c7_i32_50 = arith.constant 7 : i32
    %158 = arith.subi %c7_i32_50, %c5_i32 : i32
    %cst_51 = arith.constant dense<0.000000e+00> : vector<2x256xf32>
    %159 = tpu.matmul %157, %0, %cst_51 {dimension_numbers = #tpu.dot_dimension_numbers<[1], [0], [0], [1], [0, 0, 1, 1], [], []>} : vector<2x128xf32>, vector<128x256xf32>, vector<2x256xf32> -> vector<2x256xf32>
    %160 = arith.index_cast %158 : i32 to index
    %c0_52 = arith.constant 0 : index
    %161 = vector.load %arg3[%160, %c0_52] : memref<8x256xf32, #tpu.memory_space<vmem>>, vector<1x256xf32>
    %162 = vector.broadcast %161 : vector<1x256xf32> to vector<2x256xf32>
    %163 = arith.addf %159, %162 : vector<2x256xf32>
    %164 = math.tanh %163 : vector<2x256xf32>
    %cst_53 = arith.constant dense<0.000000e+00> : vector<2x128xf32>
    %165 = tpu.matmul %164, %1, %cst_53 {dimension_numbers = #tpu.dot_dimension_numbers<[1], [0], [0], [1], [0, 0, 1, 1], [], []>} : vector<2x256xf32>, vector<256x128xf32>, vector<2x128xf32> -> vector<2x128xf32>
    %166 = vector.broadcast %2 : vector<1x128xf32> to vector<2x128xf32>
    %167 = arith.addf %165, %166 : vector<2x128xf32>
    %168 = arith.index_cast %158 : i32 to index
    %169 = memref.load %arg4[%168] : memref<24xf32, #tpu.memory_space<smem>>
    %c8_i32_54 = arith.constant 8 : i32
    %170 = arith.addi %c8_i32_54, %158 : i32
    %171 = arith.index_cast %170 : i32 to index
    %172 = memref.load %arg4[%171] : memref<24xf32, #tpu.memory_space<smem>>
    %c16_i32_55 = arith.constant 16 : i32
    %173 = arith.addi %c16_i32_55, %158 : i32
    %174 = arith.index_cast %173 : i32 to index
    %175 = memref.load %arg4[%174] : memref<24xf32, #tpu.memory_space<smem>>
    %c0_56 = arith.constant 0 : index
    %176 = arith.index_cast %c5_i32 : i32 to index
    %c0_57 = arith.constant 0 : index
    %c0_58 = arith.constant 0 : index
    %177 = vector.load %arg2[%c0_56, %176, %c0_57, %c0_58] : memref<1x8x2x128xf32, #tpu.memory_space<vmem>>, vector<1x1x2x128xf32>
    %178 = vector.shape_cast %177 : vector<1x1x2x128xf32> to vector<2x128xf32>
    %179 = vector.broadcast %169 : f32 to vector<2x128xf32>
    %180 = arith.mulf %179, %157 : vector<2x128xf32>
    %181 = vector.broadcast %172 : f32 to vector<2x128xf32>
    %182 = arith.mulf %181, %167 : vector<2x128xf32>
    %183 = arith.addf %180, %182 : vector<2x128xf32>
    %184 = vector.broadcast %175 : f32 to vector<2x128xf32>
    %185 = arith.mulf %184, %178 : vector<2x128xf32>
    %186 = arith.addf %183, %185 : vector<2x128xf32>
    %187 = arith.select %7, %157, %186 : vector<2x128xi1>, vector<2x128xf32>
    %c6_i32 = arith.constant 6 : i32
    %c7_i32_59 = arith.constant 7 : i32
    %188 = arith.subi %c7_i32_59, %c6_i32 : i32
    %cst_60 = arith.constant dense<0.000000e+00> : vector<2x256xf32>
    %189 = tpu.matmul %187, %0, %cst_60 {dimension_numbers = #tpu.dot_dimension_numbers<[1], [0], [0], [1], [0, 0, 1, 1], [], []>} : vector<2x128xf32>, vector<128x256xf32>, vector<2x256xf32> -> vector<2x256xf32>
    %190 = arith.index_cast %188 : i32 to index
    %c0_61 = arith.constant 0 : index
    %191 = vector.load %arg3[%190, %c0_61] : memref<8x256xf32, #tpu.memory_space<vmem>>, vector<1x256xf32>
    %192 = vector.broadcast %191 : vector<1x256xf32> to vector<2x256xf32>
    %193 = arith.addf %189, %192 : vector<2x256xf32>
    %194 = math.tanh %193 : vector<2x256xf32>
    %cst_62 = arith.constant dense<0.000000e+00> : vector<2x128xf32>
    %195 = tpu.matmul %194, %1, %cst_62 {dimension_numbers = #tpu.dot_dimension_numbers<[1], [0], [0], [1], [0, 0, 1, 1], [], []>} : vector<2x256xf32>, vector<256x128xf32>, vector<2x128xf32> -> vector<2x128xf32>
    %196 = vector.broadcast %2 : vector<1x128xf32> to vector<2x128xf32>
    %197 = arith.addf %195, %196 : vector<2x128xf32>
    %198 = arith.index_cast %188 : i32 to index
    %199 = memref.load %arg4[%198] : memref<24xf32, #tpu.memory_space<smem>>
    %c8_i32_63 = arith.constant 8 : i32
    %200 = arith.addi %c8_i32_63, %188 : i32
    %201 = arith.index_cast %200 : i32 to index
    %202 = memref.load %arg4[%201] : memref<24xf32, #tpu.memory_space<smem>>
    %c16_i32_64 = arith.constant 16 : i32
    %203 = arith.addi %c16_i32_64, %188 : i32
    %204 = arith.index_cast %203 : i32 to index
    %205 = memref.load %arg4[%204] : memref<24xf32, #tpu.memory_space<smem>>
    %c0_65 = arith.constant 0 : index
    %206 = arith.index_cast %c6_i32 : i32 to index
    %c0_66 = arith.constant 0 : index
    %c0_67 = arith.constant 0 : index
    %207 = vector.load %arg2[%c0_65, %206, %c0_66, %c0_67] : memref<1x8x2x128xf32, #tpu.memory_space<vmem>>, vector<1x1x2x128xf32>
    %208 = vector.shape_cast %207 : vector<1x1x2x128xf32> to vector<2x128xf32>
    %209 = vector.broadcast %199 : f32 to vector<2x128xf32>
    %210 = arith.mulf %209, %187 : vector<2x128xf32>
    %211 = vector.broadcast %202 : f32 to vector<2x128xf32>
    %212 = arith.mulf %211, %197 : vector<2x128xf32>
    %213 = arith.addf %210, %212 : vector<2x128xf32>
    %214 = vector.broadcast %205 : f32 to vector<2x128xf32>
    %215 = arith.mulf %214, %208 : vector<2x128xf32>
    %216 = arith.addf %213, %215 : vector<2x128xf32>
    %217 = arith.select %7, %187, %216 : vector<2x128xi1>, vector<2x128xf32>
    %c7_i32_68 = arith.constant 7 : i32
    %c7_i32_69 = arith.constant 7 : i32
    %218 = arith.subi %c7_i32_69, %c7_i32_68 : i32
    %cst_70 = arith.constant dense<0.000000e+00> : vector<2x256xf32>
    %219 = tpu.matmul %217, %0, %cst_70 {dimension_numbers = #tpu.dot_dimension_numbers<[1], [0], [0], [1], [0, 0, 1, 1], [], []>} : vector<2x128xf32>, vector<128x256xf32>, vector<2x256xf32> -> vector<2x256xf32>
    %220 = arith.index_cast %218 : i32 to index
    %c0_71 = arith.constant 0 : index
    %221 = vector.load %arg3[%220, %c0_71] : memref<8x256xf32, #tpu.memory_space<vmem>>, vector<1x256xf32>
    %222 = vector.broadcast %221 : vector<1x256xf32> to vector<2x256xf32>
    %223 = arith.addf %219, %222 : vector<2x256xf32>
    %224 = math.tanh %223 : vector<2x256xf32>
    %cst_72 = arith.constant dense<0.000000e+00> : vector<2x128xf32>
    %225 = tpu.matmul %224, %1, %cst_72 {dimension_numbers = #tpu.dot_dimension_numbers<[1], [0], [0], [1], [0, 0, 1, 1], [], []>} : vector<2x256xf32>, vector<256x128xf32>, vector<2x128xf32> -> vector<2x128xf32>
    %226 = vector.broadcast %2 : vector<1x128xf32> to vector<2x128xf32>
    %227 = arith.addf %225, %226 : vector<2x128xf32>
    %228 = arith.index_cast %218 : i32 to index
    %229 = memref.load %arg4[%228] : memref<24xf32, #tpu.memory_space<smem>>
    %c8_i32_73 = arith.constant 8 : i32
    %230 = arith.addi %c8_i32_73, %218 : i32
    %231 = arith.index_cast %230 : i32 to index
    %232 = memref.load %arg4[%231] : memref<24xf32, #tpu.memory_space<smem>>
    %c16_i32_74 = arith.constant 16 : i32
    %233 = arith.addi %c16_i32_74, %218 : i32
    %234 = arith.index_cast %233 : i32 to index
    %235 = memref.load %arg4[%234] : memref<24xf32, #tpu.memory_space<smem>>
    %c0_75 = arith.constant 0 : index
    %236 = arith.index_cast %c7_i32_68 : i32 to index
    %c0_76 = arith.constant 0 : index
    %c0_77 = arith.constant 0 : index
    %237 = vector.load %arg2[%c0_75, %236, %c0_76, %c0_77] : memref<1x8x2x128xf32, #tpu.memory_space<vmem>>, vector<1x1x2x128xf32>
    %238 = vector.shape_cast %237 : vector<1x1x2x128xf32> to vector<2x128xf32>
    %239 = vector.broadcast %229 : f32 to vector<2x128xf32>
    %240 = arith.mulf %239, %217 : vector<2x128xf32>
    %241 = vector.broadcast %232 : f32 to vector<2x128xf32>
    %242 = arith.mulf %241, %227 : vector<2x128xf32>
    %243 = arith.addf %240, %242 : vector<2x128xf32>
    %244 = vector.broadcast %235 : f32 to vector<2x128xf32>
    %245 = arith.mulf %244, %238 : vector<2x128xf32>
    %246 = arith.addf %243, %245 : vector<2x128xf32>
    %247 = arith.select %7, %217, %246 : vector<2x128xi1>, vector<2x128xf32>
    %c8_i32_78 = arith.constant 8 : i32
    %c0_79 = arith.constant 0 : index
    %c0_80 = arith.constant 0 : index
    %c0_81 = arith.constant 0 : index
    %248 = vector.load %arg8[%c0_79, %c0_80, %c0_81] : memref<1x2x128xf32, #tpu.memory_space<vmem>>, vector<1x2x128xf32>
    %249 = vector.shape_cast %248 : vector<1x2x128xf32> to vector<2x128xf32>
    %250 = vector.shape_cast %247 : vector<2x128xf32> to vector<1x2x128xf32>
    tpu.vector_store %arg8[%c0_79, %c0_80, %c0_81], %250 {strides = array<i32>} : memref<1x2x128xf32, #tpu.memory_space<vmem>>, vector<1x2x128xf32>,
    return
  }
  func.func @transform_0(%arg0: i32) -> (i32, i32, i32) {
    %c0_i32 = arith.constant 0 : i32
    %c0_i32_0 = arith.constant 0 : i32
    %c0_i32_1 = arith.constant 0 : i32
    return %arg0, %c0_i32, %c0_i32_0 : i32, i32, i32
  }
  func.func @transform_1(%arg0: i32) -> (i32, i32, i32, i32) {
    %c0_i32 = arith.constant 0 : i32
    %c0_i32_0 = arith.constant 0 : i32
    %c0_i32_1 = arith.constant 0 : i32
    %c0_i32_2 = arith.constant 0 : i32
    return %arg0, %c0_i32, %c0_i32_0, %c0_i32_1 : i32, i32, i32, i32
  }
  func.func @transform_2(%arg0: i32) -> (i32, i32) {
    %c0_i32 = arith.constant 0 : i32
    %c0_i32_0 = arith.constant 0 : i32
    %c0_i32_1 = arith.constant 0 : i32
    return %c0_i32, %c0_i32_0 : i32, i32
  }
  func.func @transform_3(%arg0: i32) -> i32 {
    %c0_i32 = arith.constant 0 : i32
    %c0_i32_0 = arith.constant 0 : i32
    return %c0_i32 : i32
  }
  func.func @transform_4(%arg0: i32) -> (i32, i32) {
    %c0_i32 = arith.constant 0 : i32
    %c0_i32_0 = arith.constant 0 : i32
    %c0_i32_1 = arith.constant 0 : i32
    return %c0_i32, %c0_i32_0 : i32, i32
  }
  func.func @transform_5(%arg0: i32) -> (i32, i32) {
    %c0_i32 = arith.constant 0 : i32
    %c0_i32_0 = arith.constant 0 : i32
    %c0_i32_1 = arith.constant 0 : i32
    return %c0_i32, %c0_i32_0 : i32, i32
  }
  func.func @transform_6(%arg0: i32) -> (i32, i32) {
    %c0_i32 = arith.constant 0 : i32
    %c0_i32_0 = arith.constant 0 : i32
    %c0_i32_1 = arith.constant 0 : i32
    return %c0_i32, %c0_i32_0 : i32, i32
  }
  func.func @transform_7(%arg0: i32) -> (i32, i32, i32) {
    %c0_i32 = arith.constant 0 : i32
    %c0_i32_0 = arith.constant 0 : i32
    %c0_i32_1 = arith.constant 0 : i32
    return %arg0, %c0_i32, %c0_i32_0 : i32, i32, i32
  }
}

</mosaic_0001>

<llo_original>
// kernel: tpu_custom_call.1
$region0: #{tpu_custom_call.1}
  #allocation0 [shape = 'u32[]', space=smem, size = 0x4, offset = 0x4, fixed_abs, tag = 'smem constant byte address 0x4 - core index']
  #allocation1 [shape = 'u32[144,128]{1,0:T(1,128)}', space=vmem, size = 0x12000, scoped, tag = 'internal scratch']
  %s0 = inlined_call_operand.hbm [shape: f32[1,2,128], index: 0, kind: input, shape index: {}]
  %s1 = inlined_call_operand.hbm [shape: f32[1,8,2,128], index: 1, kind: input, shape index: {}]
  %s2 = inlined_call_operand.hbm [shape: f32[8,256], index: 2, kind: input, shape index: {}]
  %s3 = inlined_call_operand.vmem [shape: f32[24], index: 3, kind: input, shape index: {}]
  %s4 = inlined_call_operand.hbm [shape: f32[128,256], index: 4, kind: input, shape index: {}]
  %s5 = inlined_call_operand.hbm [shape: f32[256,128], index: 5, kind: input, shape index: {}]
  %s6 = inlined_call_operand.vmem [shape: f32[1,128], index: 6, kind: input, shape index: {}]
  %s7 = inlined_call_operand.hbm [shape: f32[1,2,128], index: 7, kind: output, shape index: {}]
  %s8 = sld [smem:[#allocation0]]
  $region62: #{tpu_custom_call.1} parent=0
    _
  %s10 = ssub.s32 1, %s8
  %s11 = scalar_select 0, %s10, %s8
  $region1: #{tpu_custom_call.1} parent=0
    #allocation2 [shape = 'u8[1024]{0}', space=vmem, size = 0x400, scoped, tag = 'input window, operand 0, single buffered']
    #allocation3 [shape = 's32[1]{0}', space=sflag, size = 0x4, scoped, tag = 'scoped memory for tpu_custom_call.1']
    #allocation4 [shape = 's32[1]{0}', space=sflag, size = 0x4, scoped, tag = 'scoped memory for tpu_custom_call.1']
    #allocation5 [shape = 's32[1]{0}', space=sflag, size = 0x4, scoped, tag = 'scoped memory for tpu_custom_call.1']
    #allocation6 [shape = 'u8[8192]{0}', space=vmem, size = 0x2000, scoped, tag = 'input window, operand 1, single buffered']
    #allocation7 [shape = 's32[1]{0}', space=sflag, size = 0x4, scoped, tag = 'scoped memory for tpu_custom_call.1']
    #allocation8 [shape = 'u8[8192]{0}', space=vmem, size = 0x2000, scoped, tag = 'input window, operand 2, single buffered']
    #allocation9 [shape = 'u8[512]{0}', space=smem, size = 0x200, scoped, tag = 'input window, operand 3, single buffered']
    #allocation10 [shape = 'u8[131072]{0}', space=vmem, size = 0x20000, scoped, tag = 'input window, operand 4, single buffered']
    #allocation11 [shape = 's32[1]{0}', space=sflag, size = 0x4, scoped, tag = 'scoped memory for tpu_custom_call.1']
    #allocation12 [shape = 'u8[131072]{0}', space=vmem, size = 0x20000, scoped, tag = 'input window, operand 5, single buffered']
    #allocation13 [shape = 'u8[1024]{0}', space=vmem, size = 0x400, scoped, tag = 'output window, operand 0, single buffered']
    %12 = vsyncpa [#allocation3], 0
    %13 = vsyncpa [#allocation7], 0
    %14 = vsyncpa [#allocation5], 0
    %15 = vsyncpa [#allocation11], 0
    %16 = vsyncpa [#allocation4], 0
    // Predicated region
    $region2: #{tpu_custom_call.1} parent=1 // pred_check
      _
    $region3: #{tpu_custom_call.1} parent=1 // pred_check_branch
      %18 = sbr.rel (0) target = $region5
    $region4: #{tpu_custom_call.1} parent=1 // pred_region
      %s20 = ssub.s32 32, 32
      %21 = vsyncadd [#allocation3], %s20
      %s23 = sshll.u32 [#allocation2], 4
      %s24 = int_to_ptr.vmem [resolvable:$true] %s23
      %26 = dma.hbm_to_vmem [thread:$0]  %s0, 32, %s24, [#allocation3]
    $region5: #{tpu_custom_call.1} parent=1 // pred_fallthru
      _
    // Predicated region
    $region6: #{tpu_custom_call.1} parent=1 // pred_check
      _
    $region7: #{tpu_custom_call.1} parent=1 // pred_check_branch
      %28 = sbr.rel (0) target = $region9
    $region8: #{tpu_custom_call.1} parent=1 // pred_region
      %s30 = ssub.s32 256, 256
      %31 = vsyncadd [#allocation7], %s30
      %s32 = sshll.u32 [#allocation6], 4
      %s33 = int_to_ptr.vmem [resolvable:$true] %s32
      %38 = dma.hbm_to_vmem [thread:$0]  %s1, 256, %s33, [#allocation7], 32, 32, 2
    $region9: #{tpu_custom_call.1} parent=1 // pred_fallthru
      _
    // Predicated region
    $region10: #{tpu_custom_call.1} parent=1 // pred_check
      _
    $region11: #{tpu_custom_call.1} parent=1 // pred_check_branch
      %40 = sbr.rel (0) target = $region13
    $region12: #{tpu_custom_call.1} parent=1 // pred_region
      %s42 = ssub.s32 256, 256
      %43 = vsyncadd [#allocation7], %s42
      %s45 = sshll.u32 [#allocation8], 4
      %s46 = int_to_ptr.vmem [resolvable:$true] %s45
      %48 = dma.hbm_to_vmem [thread:$0]  %s2, 256, %s46, [#allocation7]
    $region13: #{tpu_custom_call.1} parent=1 // pred_fallthru
      _
    // Predicated region
    $region14: #{tpu_custom_call.1} parent=1 // pred_check
      _
    $region15: #{tpu_custom_call.1} parent=1 // pred_check_branch
      %50 = sbr.rel (0) target = $region17
    $region16: #{tpu_custom_call.1} parent=1 // pred_region
      %s52 = ssub.s32 16, 16
      %53 = vsyncadd [#allocation5], %s52
      %s55 = sshll.u32 %s3, 4
      %s56 = int_to_ptr.vmem [resolvable:$true] %s55
      %58 = dma.vmem_to_smem %s56, 16, [#allocation9], [#allocation5]
    $region17: #{tpu_custom_call.1} parent=1 // pred_fallthru
      _
    // Predicated region
    $region18: #{tpu_custom_call.1} parent=1 // pred_check
      _
    $region19: #{tpu_custom_call.1} parent=1 // pred_check_branch
      %60 = sbr.rel (0) target = $region21
    $region20: #{tpu_custom_call.1} parent=1 // pred_region
      %s62 = ssub.s32 4096, 4096
      %63 = vsyncadd [#allocation11], %s62
      %s64 = sshll.u32 [#allocation10], 4
      %s65 = int_to_ptr.vmem [resolvable:$true] %s64
      %70 = dma.hbm_to_vmem [thread:$0]  %s4, 4096, %s65, [#allocation11], 256, 256, 16
    $region21: #{tpu_custom_call.1} parent=1 // pred_fallthru
      _
    // Predicated region
    $region22: #{tpu_custom_call.1} parent=1 // pred_check
      _
    $region23: #{tpu_custom_call.1} parent=1 // pred_check_branch
      %72 = sbr.rel (0) target = $region25
    $region24: #{tpu_custom_call.1} parent=1 // pred_region
      %s74 = ssub.s32 4096, 4096
      %75 = vsyncadd [#allocation11], %s74
      %s76 = sshll.u32 [#allocation12], 4
      %s77 = int_to_ptr.vmem [resolvable:$true] %s76
      %82 = dma.hbm_to_vmem [thread:$0]  %s5, 4096, %s77, [#allocation11], 128, 128, 8
    $region25: #{tpu_custom_call.1} parent=1 // pred_fallthru
      _
    // Predicated region
    $region26: #{tpu_custom_call.1} parent=1 // pred_check
      _
    $region27: #{tpu_custom_call.1} parent=1 // pred_check_branch
      %84 = sbr.rel (0) target = $region29
    $region28: #{tpu_custom_call.1} parent=1 // pred_region
      _
    $region29: #{tpu_custom_call.1} parent=1 // pred_fallthru
      _
    // Predicated region
    $region30: #{tpu_custom_call.1} parent=1 // pred_check
      _
    $region31: #{tpu_custom_call.1} parent=1 // pred_check_branch
      %86 = sbr.rel (0) target = $region33
    $region32: #{tpu_custom_call.1} parent=1 // pred_region
      %87 = dma.done [#allocation3], 32
    $region33: #{tpu_custom_call.1} parent=1 // pred_fallthru
      _
    // Predicated region
    $region34: #{tpu_custom_call.1} parent=1 // pred_check
      _
    $region35: #{tpu_custom_call.1} parent=1 // pred_check_branch
      %89 = sbr.rel (0) target = $region37
    $region36: #{tpu_custom_call.1} parent=1 // pred_region
      %90 = dma.done [#allocation7], 256
    $region37: #{tpu_custom_call.1} parent=1 // pred_fallthru
      _
    // Predicated region
    $region38: #{tpu_custom_call.1} parent=1 // pred_check
      _
    $region39: #{tpu_custom_call.1} parent=1 // pred_check_branch
      %92 = sbr.rel (0) target = $region41
    $region40: #{tpu_custom_call.1} parent=1 // pred_region
      %93 = dma.done [#allocation7], 256
    $region41: #{tpu_custom_call.1} parent=1 // pred_fallthru
      _
    // Predicated region
    $region42: #{tpu_custom_call.1} parent=1 // pred_check
      _
    $region43: #{tpu_custom_call.1} parent=1 // pred_check_branch
      %95 = sbr.rel (0) target = $region45
    $region44: #{tpu_custom_call.1} parent=1 // pred_region
      %96 = dma.done [#allocation5], 16
    $region45: #{tpu_custom_call.1} parent=1 // pred_fallthru
      _
    // Predicated region
    $region46: #{tpu_custom_call.1} parent=1 // pred_check
      _
    $region47: #{tpu_custom_call.1} parent=1 // pred_check_branch
      %98 = sbr.rel (0) target = $region49
    $region48: #{tpu_custom_call.1} parent=1 // pred_region
      %99 = dma.done [#allocation11], 4096
    $region49: #{tpu_custom_call.1} parent=1 // pred_fallthru
      _
    // Predicated region
    $region50: #{tpu_custom_call.1} parent=1 // pred_check
      _
    $region51: #{tpu_custom_call.1} parent=1 // pred_check_branch
      %101 = sbr.rel (0) target = $region53
    $region52: #{tpu_custom_call.1} parent=1 // pred_region
      %102 = dma.done [#allocation11], 4096
    $region53: #{tpu_custom_call.1} parent=1 // pred_fallthru
      _
    %103 = sfence
    %v104 = vld [vmem:[#allocation10] sm:$0xff]
    %v105 = vld [vmem:[#allocation10 + $0x8] sm:$0xff]
    %v106 = vld [vmem:[#allocation10 + $0x10] sm:$0xff]
    %v107 = vld [vmem:[#allocation10 + $0x18] sm:$0xff]
    %v108 = vld [vmem:[#allocation10 + $0x20] sm:$0xff]
    %v109 = vld [vmem:[#allocation10 + $0x28] sm:$0xff]
    %v110 = vld [vmem:[#allocation10 + $0x30] sm:$0xff]
    %v111 = vld [vmem:[#allocation10 + $0x38] sm:$0xff]
    %v112 = vld [vmem:[#allocation10 + $0x40] sm:$0xff]
    %v113 = vld [vmem:[#allocation10 + $0x48] sm:$0xff]
    %v114 = vld [vmem:[#allocation10 + $0x50] sm:$0xff]
    %v115 = vld [vmem:[#allocation10 + $0x58] sm:$0xff]
    %v116 = vld [vmem:[#allocation10 + $0x60] sm:$0xff]
    %v117 = vld [vmem:[#allocation10 + $0x68] sm:$0xff]
    %v118 = vld [vmem:[#allocation10 + $0x70] sm:$0xff]
    %v119 = vld [vmem:[#allocation10 + $0x78] sm:$0xff]
    %v120 = vld [vmem:[#allocation10 + $0x80] sm:$0xff]
    %v121 = vld [vmem:[#allocation10 + $0x88] sm:$0xff]
    %v122 = vld [vmem:[#allocation10 + $0x90] sm:$0xff]
    %v123 = vld [vmem:[#allocation10 + $0x98] sm:$0xff]
    %v124 = vld [vmem:[#allocation10 + $0xa0] sm:$0xff]
    %v125 = vld [vmem:[#allocation10 + $0xa8] sm:$0xff]
    %v126 = vld [vmem:[#allocation10 + $0xb0] sm:$0xff]
    %v127 = vld [vmem:[#allocation10 + $0xb8] sm:$0xff]
    %v128 = vld [vmem:[#allocation10 + $0xc0] sm:$0xff]
    %v129 = vld [vmem:[#allocation10 + $0xc8] sm:$0xff]
    %v130 = vld [vmem:[#allocation10 + $0xd0] sm:$0xff]
    %v131 = vld [vmem:[#allocation10 + $0xd8] sm:$0xff]
    %v132 = vld [vmem:[#allocation10 + $0xe0] sm:$0xff]
    %v133 = vld [vmem:[#allocation10 + $0xe8] sm:$0xff]
    %v134 = vld [vmem:[#allocation10 + $0xf0] sm:$0xff]
    %v135 = vld [vmem:[#allocation10 + $0xf8] sm:$0xff]
    %v136 = vld [vmem:[#allocation12] sm:$0xff]
    %v137 = vld [vmem:[#allocation12 + $0x8] sm:$0xff]
    %v138 = vld [vmem:[#allocation12 + $0x10] sm:$0xff]
    %v139 = vld [vmem:[#allocation12 + $0x18] sm:$0xff]
    %v140 = vld [vmem:[#allocation12 + $0x20] sm:$0xff]
    %v141 = vld [vmem:[#allocation12 + $0x28] sm:$0xff]
    %v142 = vld [vmem:[#allocation12 + $0x30] sm:$0xff]
    %v143 = vld [vmem:[#allocation12 + $0x38] sm:$0xff]
    %v144 = vld [vmem:[#allocation12 + $0x40] sm:$0xff]
    %v145 = vld [vmem:[#allocation12 + $0x48] sm:$0xff]
    %v146 = vld [vmem:[#allocation12 + $0x50] sm:$0xff]
    %v147 = vld [vmem:[#allocation12 + $0x58] sm:$0xff]
    %v148 = vld [vmem:[#allocation12 + $0x60] sm:$0xff]
    %v149 = vld [vmem:[#allocation12 + $0x68] sm:$0xff]
    %v150 = vld [vmem:[#allocation12 + $0x70] sm:$0xff]
    %v151 = vld [vmem:[#allocation12 + $0x78] sm:$0xff]
    %v152 = vld [vmem:[#allocation12 + $0x80] sm:$0xff]
    %v153 = vld [vmem:[#allocation12 + $0x88] sm:$0xff]
    %v154 = vld [vmem:[#allocation12 + $0x90] sm:$0xff]
    %v155 = vld [vmem:[#allocation12 + $0x98] sm:$0xff]
    %v156 = vld [vmem:[#allocation12 + $0xa0] sm:$0xff]
    %v157 = vld [vmem:[#allocation12 + $0xa8] sm:$0xff]
    %v158 = vld [vmem:[#allocation12 + $0xb0] sm:$0xff]
    %v159 = vld [vmem:[#allocation12 + $0xb8] sm:$0xff]
    %v160 = vld [vmem:[#allocation12 + $0xc0] sm:$0xff]
    %v161 = vld [vmem:[#allocation12 + $0xc8] sm:$0xff]
    %v162 = vld [vmem:[#allocation12 + $0xd0] sm:$0xff]
    %v163 = vld [vmem:[#allocation12 + $0xd8] sm:$0xff]
    %v164 = vld [vmem:[#allocation12 + $0xe0] sm:$0xff]
    %v165 = vld [vmem:[#allocation12 + $0xe8] sm:$0xff]
    %v166 = vld [vmem:[#allocation12 + $0xf0] sm:$0xff]
    %v167 = vld [vmem:[#allocation12 + $0xf8] sm:$0xff]
    %v168 = vld [vmem:[%s6] sm:$0x1]
    %v169 = vld [vmem:[#allocation2] sm:$0x3]
    %v170 = vlaneseq
    %v171 = vand.u32 %v170, 127
    %vm172 = vcmp.lt.s32.totalorder %v171, 16
    %s173 = scalar_lea.vmem [#allocation8], 7
    %v174 = vld [vmem:[%s173] ss:$8 sm:$0x3]
    %v176 = vlaneseq
    %v177 = vshrl.u32 %v176, 7
    %v178 = vsub.s32 0, %v177
    %v179 = vrot.slane %v174, %v178
    %v180 = vlaneseq
    %v181 = vshrl.u32 %v180, 7
    %v182 = vsub.s32 1, %v181
    %v183 = vrot.slane %v174, %v182
    %186 = vmatprep.subr.mxu0 %v105
    %187 = vmatpush1.msra.mxu0 %v104
    %188 = vmatprep.subr.mxu0 %v107
    %189 = vmatpush1.msra.mxu0 %v106
    %190 = vmatprep.subr.mxu0 %v109
    %191 = vmatpush1.msra.mxu0 %v108
    %192 = vmatprep.subr.mxu0 %v111
    %193 = vmatpush1.msra.mxu0 %v110
    %194 = vmatprep.subr.mxu0 %v113
    %195 = vmatpush1.msra.mxu0 %v112
    %196 = vmatprep.subr.mxu0 %v115
    %197 = vmatpush1.msra.mxu0 %v114
    %198 = vmatprep.subr.mxu0 %v117
    %199 = vmatpush1.msra.mxu0 %v116
    %200 = vmatprep.subr.mxu0 %v119
    %201 = vmatpush1.msra.mxu0 %v118
    %202 = vmatprep.subr.mxu0 %v121
    %203 = vmatpush1.msra.mxu0 %v120
    %204 = vmatprep.subr.mxu0 %v123
    %205 = vmatpush1.msra.mxu0 %v122
    %206 = vmatprep.subr.mxu0 %v125
    %207 = vmatpush1.msra.mxu0 %v124
    %208 = vmatprep.subr.mxu0 %v127
    %209 = vmatpush1.msra.mxu0 %v126
    %210 = vmatprep.subr.mxu0 %v129
    %211 = vmatpush1.msra.mxu0 %v128
    %212 = vmatprep.subr.mxu0 %v131
    %213 = vmatpush1.msra.mxu0 %v130
    %214 = vmatprep.subr.mxu0 %v133
    %215 = vmatpush1.msra.mxu0 %v132
    %216 = vmatprep.subr.mxu0 %v135
    %217 = vmatpush1.msra.mxu0 %v134
    %218 = vmatprep.subr.mxu0 0.0
    %219 = vmatpush1.msra.mxu0 0.0
    %220 = vmatprep.subr.mxu0 0.0
    %221 = vmatpush1.msra.mxu0 0.0
    %222 = vmatprep.subr.mxu0 0.0
    %223 = vmatpush1.msra.mxu0 0.0
    %224 = vmatprep.subr.mxu0 0.0
    %225 = vmatpush1.msra.mxu0 0.0
    %226 = vmatprep.subr.mxu0 0.0
    %227 = vmatpush1.msra.mxu0 0.0
    %228 = vmatprep.subr.mxu0 0.0
    %229 = vmatpush1.msra.mxu0 0.0
    %230 = vmatprep.subr.mxu0 0.0
    %231 = vmatpush1.msra.mxu0 0.0
    %232 = vmatprep.subr.mxu0 0.0
    %233 = vmatpush1.msra.mxu0 0.0
    %234 = vmatprep.subr.mxu0 0.0
    %235 = vmatpush1.msra.mxu0 0.0
    %236 = vmatprep.subr.mxu0 0.0
    %237 = vmatpush1.msra.mxu0 0.0
    %238 = vmatprep.subr.mxu0 0.0
    %239 = vmatpush1.msra.mxu0 0.0
    %240 = vmatprep.subr.mxu0 0.0
    %241 = vmatpush1.msra.mxu0 0.0
    %242 = vmatprep.subr.mxu0 0.0
    %243 = vmatpush1.msra.mxu0 0.0
    %244 = vmatprep.subr.mxu0 0.0
    %245 = vmatpush1.msra.mxu0 0.0
    %246 = vmatprep.subr.mxu0 0.0
    %247 = vmatpush1.msra.mxu0 0.0
    %248 = vmatprep.subr.mxu0 0.0
    %249 = vmatpush1.msra.mxu0 0.0
    %250 = vmatprep.mubr.f32.mxu0 0.0
    %251 = vmatmul.mubr.f32.gmra.mrb[0].mxu0 %v169
    %v252 = vpop.f32.mrb[0].mxu0
    %v253 = vadd.f32 %v179, %v252
    %v254 = vpop.f32.mrb[0].mxu0
    %v255 = vadd.f32 %v183, %v254
    %256 = vdwg.mxu0
    %v257 = vtanh.pop %v253
    %v258 = vtanh.pop %v255
    %v260 = vlaneseq
    %v261 = vshrl.u32 %v260, 7
    %v262 = vsub.s32 0, %v261
    %v263 = vrot.slane %v168, %v262
    %265 = vmatprep.subr.mxu0 0.0
    %266 = vmatpush1.msra.mxu0 %v136
    %267 = vmatprep.subr.mxu0 0.0
    %268 = vmatpush1.msra.mxu0 %v137
    %269 = vmatprep.subr.mxu0 0.0
    %270 = vmatpush1.msra.mxu0 %v138
    %271 = vmatprep.subr.mxu0 0.0
    %272 = vmatpush1.msra.mxu0 %v139
    %273 = vmatprep.subr.mxu0 0.0
    %274 = vmatpush1.msra.mxu0 %v140
    %275 = vmatprep.subr.mxu0 0.0
    %276 = vmatpush1.msra.mxu0 %v141
    %277 = vmatprep.subr.mxu0 0.0
    %278 = vmatpush1.msra.mxu0 %v142
    %279 = vmatprep.subr.mxu0 0.0
    %280 = vmatpush1.msra.mxu0 %v143
    %281 = vmatprep.subr.mxu0 0.0
    %282 = vmatpush1.msra.mxu0 %v144
    %283 = vmatprep.subr.mxu0 0.0
    %284 = vmatpush1.msra.mxu0 %v145
    %285 = vmatprep.subr.mxu0 0.0
    %286 = vmatpush1.msra.mxu0 %v146
    %287 = vmatprep.subr.mxu0 0.0
    %288 = vmatpush1.msra.mxu0 %v147
    %289 = vmatprep.subr.mxu0 0.0
    %290 = vmatpush1.msra.mxu0 %v148
    %291 = vmatprep.subr.mxu0 0.0
    %292 = vmatpush1.msra.mxu0 %v149
    %293 = vmatprep.subr.mxu0 0.0
    %294 = vmatpush1.msra.mxu0 %v150
    %295 = vmatprep.subr.mxu0 0.0
    %296 = vmatpush1.msra.mxu0 %v151
    %297 = vmatprep.subr.mxu0 0.0
    %298 = vmatpush1.msra.mxu0 %v152
    %299 = vmatprep.subr.mxu0 0.0
    %300 = vmatpush1.msra.mxu0 %v153
    %301 = vmatprep.subr.mxu0 0.0
    %302 = vmatpush1.msra.mxu0 %v154
    %303 = vmatprep.subr.mxu0 0.0
    %304 = vmatpush1.msra.mxu0 %v155
    %305 = vmatprep.subr.mxu0 0.0
    %306 = vmatpush1.msra.mxu0 %v156
    %307 = vmatprep.subr.mxu0 0.0
    %308 = vmatpush1.msra.mxu0 %v157
    %309 = vmatprep.subr.mxu0 0.0
    %310 = vmatpush1.msra.mxu0 %v158
    %311 = vmatprep.subr.mxu0 0.0
    %312 = vmatpush1.msra.mxu0 %v159
    %313 = vmatprep.subr.mxu0 0.0
    %314 = vmatpush1.msra.mxu0 %v160
    %315 = vmatprep.subr.mxu0 0.0
    %316 = vmatpush1.msra.mxu0 %v161
    %317 = vmatprep.subr.mxu0 0.0
    %318 = vmatpush1.msra.mxu0 %v162
    %319 = vmatprep.subr.mxu0 0.0
    %320 = vmatpush1.msra.mxu0 %v163
    %321 = vmatprep.subr.mxu0 0.0
    %322 = vmatpush1.msra.mxu0 %v164
    %323 = vmatprep.subr.mxu0 0.0
    %324 = vmatpush1.msra.mxu0 %v165
    %325 = vmatprep.subr.mxu0 0.0
    %326 = vmatpush1.msra.mxu0 %v166
    %327 = vmatprep.subr.mxu0 0.0
    %328 = vmatpush1.msra.mxu0 %v167
    %329 = vmatprep.mubr.f32.mxu0 %v258
    %330 = vmatmul.mubr.f32.gmra.mrb[0].mxu0 %v257
    %v331 = vpop.f32.mrb[0].mxu0
    %v332 = vadd.f32 %v263, %v331
    %v333 = vpop.f32.mrb[0].mxu0
    %334 = vdwg.mxu0
    %s335 = sld [smem:[#allocation9 + $0x7]]
    %s336 = sld [smem:[#allocation9 + $0xf]]
    %s337 = sld [smem:[#allocation9 + $0x17]]
    %v338 = vld [vmem:[#allocation6] sm:$0x3]
    %v339 = vstv %s335
    %v340 = vmul.f32 %v339, %v169
    %v341 = vstv %s336
    %v342 = vmul.f32 %v341, %v332
    %v343 = vadd.f32 %v340, %v342
    %v344 = vstv %s337
    %v345 = vmul.f32 %v344, %v338
    %v346 = vadd.f32 %v343, %v345
    %v347 = vsel %vm172, %v169, %v346
    %s348 = scalar_lea.vmem [#allocation8], 6
    %v349 = vld [vmem:[%s348] ss:$8 sm:$0x3]
    %v351 = vlaneseq
    %v352 = vshrl.u32 %v351, 7
    %v353 = vsub.s32 0, %v352
    %v354 = vrot.slane %v349, %v353
    %v355 = vlaneseq
    %v356 = vshrl.u32 %v355, 7
    %v357 = vsub.s32 1, %v356
    %v358 = vrot.slane %v349, %v357
    %361 = vmatprep.subr.mxu0 %v105
    %362 = vmatpush1.msra.mxu0 %v104
    %363 = vmatprep.subr.mxu0 %v107
    %364 = vmatpush1.msra.mxu0 %v106
    %365 = vmatprep.subr.mxu0 %v109
    %366 = vmatpush1.msra.mxu0 %v108
    %367 = vmatprep.subr.mxu0 %v111
    %368 = vmatpush1.msra.mxu0 %v110
    %369 = vmatprep.subr.mxu0 %v113
    %370 = vmatpush1.msra.mxu0 %v112
    %371 = vmatprep.subr.mxu0 %v115
    %372 = vmatpush1.msra.mxu0 %v114
    %373 = vmatprep.subr.mxu0 %v117
    %374 = vmatpush1.msra.mxu0 %v116
    %375 = vmatprep.subr.mxu0 %v119
    %376 = vmatpush1.msra.mxu0 %v118
    %377 = vmatprep.subr.mxu0 %v121
    %378 = vmatpush1.msra.mxu0 %v120
    %379 = vmatprep.subr.mxu0 %v123
    %380 = vmatpush1.msra.mxu0 %v122
    %381 = vmatprep.subr.mxu0 %v125
    %382 = vmatpush1.msra.mxu0 %v124
    %383 = vmatprep.subr.mxu0 %v127
    %384 = vmatpush1.msra.mxu0 %v126
    %385 = vmatprep.subr.mxu0 %v129
    %386 = vmatpush1.msra.mxu0 %v128
    %387 = vmatprep.subr.mxu0 %v131
    %388 = vmatpush1.msra.mxu0 %v130
    %389 = vmatprep.subr.mxu0 %v133
    %390 = vmatpush1.msra.mxu0 %v132
    %391 = vmatprep.subr.mxu0 %v135
    %392 = vmatpush1.msra.mxu0 %v134
    %393 = vmatprep.subr.mxu0 0.0
    %394 = vmatpush1.msra.mxu0 0.0
    %395 = vmatprep.subr.mxu0 0.0
    %396 = vmatpush1.msra.mxu0 0.0
    %397 = vmatprep.subr.mxu0 0.0
    %398 = vmatpush1.msra.mxu0 0.0
    %399 = vmatprep.subr.mxu0 0.0
    %400 = vmatpush1.msra.mxu0 0.0
    %401 = vmatprep.subr.mxu0 0.0
    %402 = vmatpush1.msra.mxu0 0.0
    %403 = vmatprep.subr.mxu0 0.0
    %404 = vmatpush1.msra.mxu0 0.0
    %405 = vmatprep.subr.mxu0 0.0
    %406 = vmatpush1.msra.mxu0 0.0
    %407 = vmatprep.subr.mxu0 0.0
    %408 = vmatpush1.msra.mxu0 0.0
    %409 = vmatprep.subr.mxu0 0.0
    %410 = vmatpush1.msra.mxu0 0.0
    %411 = vmatprep.subr.mxu0 0.0
    %412 = vmatpush1.msra.mxu0 0.0
    %413 = vmatprep.subr.mxu0 0.0
    %414 = vmatpush1.msra.mxu0 0.0
    %415 = vmatprep.subr.mxu0 0.0
    %416 = vmatpush1.msra.mxu0 0.0
    %417 = vmatprep.subr.mxu0 0.0
    %418 = vmatpush1.msra.mxu0 0.0
    %419 = vmatprep.subr.mxu0 0.0
    %420 = vmatpush1.msra.mxu0 0.0
    %421 = vmatprep.subr.mxu0 0.0
    %422 = vmatpush1.msra.mxu0 0.0
    %423 = vmatprep.subr.mxu0 0.0
    %424 = vmatpush1.msra.mxu0 0.0
    %425 = vmatprep.mubr.f32.mxu0 0.0
    %426 = vmatmul.mubr.f32.gmra.mrb[0].mxu0 %v347
    %v427 = vpop.f32.mrb[0].mxu0
    %v428 = vadd.f32 %v354, %v427
    %v429 = vpop.f32.mrb[0].mxu0
    %v430 = vadd.f32 %v358, %v429
    %431 = vdwg.mxu0
    %v432 = vtanh.pop %v428
    %v433 = vtanh.pop %v430
    %434 = vmatprep.subr.mxu0 0.0
    %435 = vmatpush1.msra.mxu0 %v136
    %436 = vmatprep.subr.mxu0 0.0
    %437 = vmatpush1.msra.mxu0 %v137
    %438 = vmatprep.subr.mxu0 0.0
    %439 = vmatpush1.msra.mxu0 %v138
    %440 = vmatprep.subr.mxu0 0.0
    %441 = vmatpush1.msra.mxu0 %v139
    %442 = vmatprep.subr.mxu0 0.0
    %443 = vmatpush1.msra.mxu0 %v140
    %444 = vmatprep.subr.mxu0 0.0
    %445 = vmatpush1.msra.mxu0 %v141
    %446 = vmatprep.subr.mxu0 0.0
    %447 = vmatpush1.msra.mxu0 %v142
    %448 = vmatprep.subr.mxu0 0.0
    %449 = vmatpush1.msra.mxu0 %v143
    %450 = vmatprep.subr.mxu0 0.0
    %451 = vmatpush1.msra.mxu0 %v144
    %452 = vmatprep.subr.mxu0 0.0
    %453 = vmatpush1.msra.mxu0 %v145
    %454 = vmatprep.subr.mxu0 0.0
    %455 = vmatpush1.msra.mxu0 %v146
    %456 = vmatprep.subr.mxu0 0.0
    %457 = vmatpush1.msra.mxu0 %v147
    %458 = vmatprep.subr.mxu0 0.0
    %459 = vmatpush1.msra.mxu0 %v148
    %460 = vmatprep.subr.mxu0 0.0
    %461 = vmatpush1.msra.mxu0 %v149
    %462 = vmatprep.subr.mxu0 0.0
    %463 = vmatpush1.msra.mxu0 %v150
    %464 = vmatprep.subr.mxu0 0.0
    %465 = vmatpush1.msra.mxu0 %v151
    %466 = vmatprep.subr.mxu0 0.0
    %467 = vmatpush1.msra.mxu0 %v152
    %468 = vmatprep.subr.mxu0 0.0
    %469 = vmatpush1.msra.mxu0 %v153
    %470 = vmatprep.subr.mxu0 0.0
    %471 = vmatpush1.msra.mxu0 %v154
    %472 = vmatprep.subr.mxu0 0.0
    %473 = vmatpush1.msra.mxu0 %v155
    %474 = vmatprep.subr.mxu0 0.0
    %475 = vmatpush1.msra.mxu0 %v156
    %476 = vmatprep.subr.mxu0 0.0
    %477 = vmatpush1.msra.mxu0 %v157
    %478 = vmatprep.subr.mxu0 0.0
    %479 = vmatpush1.msra.mxu0 %v158
    %480 = vmatprep.subr.mxu0 0.0
    %481 = vmatpush1.msra.mxu0 %v159
    %482 = vmatprep.subr.mxu0 0.0
    %483 = vmatpush1.msra.mxu0 %v160
    %484 = vmatprep.subr.mxu0 0.0
    %485 = vmatpush1.msra.mxu0 %v161
    %486 = vmatprep.subr.mxu0 0.0
    %487 = vmatpush1.msra.mxu0 %v162
    %488 = vmatprep.subr.mxu0 0.0
    %489 = vmatpush1.msra.mxu0 %v163
    %490 = vmatprep.subr.mxu0 0.0
    %491 = vmatpush1.msra.mxu0 %v164
    %492 = vmatprep.subr.mxu0 0.0
    %493 = vmatpush1.msra.mxu0 %v165
    %494 = vmatprep.subr.mxu0 0.0
    %495 = vmatpush1.msra.mxu0 %v166
    %496 = vmatprep.subr.mxu0 0.0
    %497 = vmatpush1.msra.mxu0 %v167
    %498 = vmatprep.mubr.f32.mxu0 %v433
    %499 = vmatmul.mubr.f32.gmra.mrb[0].mxu0 %v432
    %v500 = vpop.f32.mrb[0].mxu0
    %v501 = vadd.f32 %v263, %v500
    %v502 = vpop.f32.mrb[0].mxu0
    %503 = vdwg.mxu0
    %s504 = sld [smem:[#allocation9 + $0x6]]
    %s505 = sld [smem:[#allocation9 + $0xe]]
    %s506 = sld [smem:[#allocation9 + $0x16]]
    %s507 = scalar_lea.vmem [#allocation6], 2
    %v508 = vld [vmem:[%s507] sm:$0x3]
    %v509 = vstv %s504
    %v510 = vmul.f32 %v509, %v347
    %v511 = vstv %s505
    %v512 = vmul.f32 %v511, %v501
    %v513 = vadd.f32 %v510, %v512
    %v514 = vstv %s506
    %v515 = vmul.f32 %v514, %v508
    %v516 = vadd.f32 %v513, %v515
    %v517 = vsel %vm172, %v169, %v516
    %s518 = scalar_lea.vmem [#allocation8], 5
    %v519 = vld [vmem:[%s518] ss:$8 sm:$0x3]
    %v521 = vlaneseq
    %v522 = vshrl.u32 %v521, 7
    %v523 = vsub.s32 0, %v522
    %v524 = vrot.slane %v519, %v523
    %v525 = vlaneseq
    %v526 = vshrl.u32 %v525, 7
    %v527 = vsub.s32 1, %v526
    %v528 = vrot.slane %v519, %v527
    %531 = vmatprep.subr.mxu0 %v105
    %532 = vmatpush1.msra.mxu0 %v104
    %533 = vmatprep.subr.mxu0 %v107
    %534 = vmatpush1.msra.mxu0 %v106
    %535 = vmatprep.subr.mxu0 %v109
    %536 = vmatpush1.msra.mxu0 %v108
    %537 = vmatprep.subr.mxu0 %v111
    %538 = vmatpush1.msra.mxu0 %v110
    %539 = vmatprep.subr.mxu0 %v113
    %540 = vmatpush1.msra.mxu0 %v112
    %541 = vmatprep.subr.mxu0 %v115
    %542 = vmatpush1.msra.mxu0 %v114
    %543 = vmatprep.subr.mxu0 %v117
    %544 = vmatpush1.msra.mxu0 %v116
    %545 = vmatprep.subr.mxu0 %v119
    %546 = vmatpush1.msra.mxu0 %v118
    %547 = vmatprep.subr.mxu0 %v121
    %548 = vmatpush1.msra.mxu0 %v120
    %549 = vmatprep.subr.mxu0 %v123
    %550 = vmatpush1.msra.mxu0 %v122
    %551 = vmatprep.subr.mxu0 %v125
    %552 = vmatpush1.msra.mxu0 %v124
    %553 = vmatprep.subr.mxu0 %v127
    %554 = vmatpush1.msra.mxu0 %v126
    %555 = vmatprep.subr.mxu0 %v129
    %556 = vmatpush1.msra.mxu0 %v128
    %557 = vmatprep.subr.mxu0 %v131
    %558 = vmatpush1.msra.mxu0 %v130
    %559 = vmatprep.subr.mxu0 %v133
    %560 = vmatpush1.msra.mxu0 %v132
    %561 = vmatprep.subr.mxu0 %v135
    %562 = vmatpush1.msra.mxu0 %v134
    %563 = vmatprep.subr.mxu0 0.0
    %564 = vmatpush1.msra.mxu0 0.0
    %565 = vmatprep.subr.mxu0 0.0
    %566 = vmatpush1.msra.mxu0 0.0
    %567 = vmatprep.subr.mxu0 0.0
    %568 = vmatpush1.msra.mxu0 0.0
    %569 = vmatprep.subr.mxu0 0.0
    %570 = vmatpush1.msra.mxu0 0.0
    %571 = vmatprep.subr.mxu0 0.0
    %572 = vmatpush1.msra.mxu0 0.0
    %573 = vmatprep.subr.mxu0 0.0
    %574 = vmatpush1.msra.mxu0 0.0
    %575 = vmatprep.subr.mxu0 0.0
    %576 = vmatpush1.msra.mxu0 0.0
    %577 = vmatprep.subr.mxu0 0.0
    %578 = vmatpush1.msra.mxu0 0.0
    %579 = vmatprep.subr.mxu0 0.0
    %580 = vmatpush1.msra.mxu0 0.0
    %581 = vmatprep.subr.mxu0 0.0
    %582 = vmatpush1.msra.mxu0 0.0
    %583 = vmatprep.subr.mxu0 0.0
    %584 = vmatpush1.msra.mxu0 0.0
    %585 = vmatprep.subr.mxu0 0.0
    %586 = vmatpush1.msra.mxu0 0.0
    %587 = vmatprep.subr.mxu0 0.0
    %588 = vmatpush1.msra.mxu0 0.0
    %589 = vmatprep.subr.mxu0 0.0
    %590 = vmatpush1.msra.mxu0 0.0
    %591 = vmatprep.subr.mxu0 0.0
    %592 = vmatpush1.msra.mxu0 0.0
    %593 = vmatprep.subr.mxu0 0.0
    %594 = vmatpush1.msra.mxu0 0.0
    %595 = vmatprep.mubr.f32.mxu0 0.0
    %596 = vmatmul.mubr.f32.gmra.mrb[0].mxu0 %v517
    %v597 = vpop.f32.mrb[0].mxu0
    %v598 = vadd.f32 %v524, %v597
    %v599 = vpop.f32.mrb[0].mxu0
    %v600 = vadd.f32 %v528, %v599
    %601 = vdwg.mxu0
    %v602 = vtanh.pop %v598
    %v603 = vtanh.pop %v600
    %604 = vmatprep.subr.mxu0 0.0
    %605 = vmatpush1.msra.mxu0 %v136
    %606 = vmatprep.subr.mxu0 0.0
    %607 = vmatpush1.msra.mxu0 %v137
    %608 = vmatprep.subr.mxu0 0.0
    %609 = vmatpush1.msra.mxu0 %v138
    %610 = vmatprep.subr.mxu0 0.0
    %611 = vmatpush1.msra.mxu0 %v139
    %612 = vmatprep.subr.mxu0 0.0
    %613 = vmatpush1.msra.mxu0 %v140
    %614 = vmatprep.subr.mxu0 0.0
    %615 = vmatpush1.msra.mxu0 %v141
    %616 = vmatprep.subr.mxu0 0.0
    %617 = vmatpush1.msra.mxu0 %v142
    %618 = vmatprep.subr.mxu0 0.0
    %619 = vmatpush1.msra.mxu0 %v143
    %620 = vmatprep.subr.mxu0 0.0
    %621 = vmatpush1.msra.mxu0 %v144
    %622 = vmatprep.subr.mxu0 0.0
    %623 = vmatpush1.msra.mxu0 %v145
    %624 = vmatprep.subr.mxu0 0.0
    %625 = vmatpush1.msra.mxu0 %v146
    %626 = vmatprep.subr.mxu0 0.0
    %627 = vmatpush1.msra.mxu0 %v147
    %628 = vmatprep.subr.mxu0 0.0
    %629 = vmatpush1.msra.mxu0 %v148
    %630 = vmatprep.subr.mxu0 0.0
    %631 = vmatpush1.msra.mxu0 %v149
    %632 = vmatprep.subr.mxu0 0.0
    %633 = vmatpush1.msra.mxu0 %v150
    %634 = vmatprep.subr.mxu0 0.0
    %635 = vmatpush1.msra.mxu0 %v151
    %636 = vmatprep.subr.mxu0 0.0
    %637 = vmatpush1.msra.mxu0 %v152
    %638 = vmatprep.subr.mxu0 0.0
    %639 = vmatpush1.msra.mxu0 %v153
    %640 = vmatprep.subr.mxu0 0.0
    %641 = vmatpush1.msra.mxu0 %v154
    %642 = vmatprep.subr.mxu0 0.0
    %643 = vmatpush1.msra.mxu0 %v155
    %644 = vmatprep.subr.mxu0 0.0
    %645 = vmatpush1.msra.mxu0 %v156
    %646 = vmatprep.subr.mxu0 0.0
    %647 = vmatpush1.msra.mxu0 %v157
    %648 = vmatprep.subr.mxu0 0.0
    %649 = vmatpush1.msra.mxu0 %v158
    %650 = vmatprep.subr.mxu0 0.0
    %651 = vmatpush1.msra.mxu0 %v159
    %652 = vmatprep.subr.mxu0 0.0
    %653 = vmatpush1.msra.mxu0 %v160
    %654 = vmatprep.subr.mxu0 0.0
    %655 = vmatpush1.msra.mxu0 %v161
    %656 = vmatprep.subr.mxu0 0.0
    %657 = vmatpush1.msra.mxu0 %v162
    %658 = vmatprep.subr.mxu0 0.0
    %659 = vmatpush1.msra.mxu0 %v163
    %660 = vmatprep.subr.mxu0 0.0
    %661 = vmatpush1.msra.mxu0 %v164
    %662 = vmatprep.subr.mxu0 0.0
    %663 = vmatpush1.msra.mxu0 %v165
    %664 = vmatprep.subr.mxu0 0.0
    %665 = vmatpush1.msra.mxu0 %v166
    %666 = vmatprep.subr.mxu0 0.0
    %667 = vmatpush1.msra.mxu0 %v167
    %668 = vmatprep.mubr.f32.mxu0 %v603
    %669 = vmatmul.mubr.f32.gmra.mrb[0].mxu0 %v602
    %v670 = vpop.f32.mrb[0].mxu0
    %v671 = vadd.f32 %v263, %v670
    %v672 = vpop.f32.mrb[0].mxu0
    %673 = vdwg.mxu0
    %s674 = sld [smem:[#allocation9 + $0x5]]
    %s675 = sld [smem:[#allocation9 + $0xd]]
    %s676 = sld [smem:[#allocation9 + $0x15]]
    %s677 = scalar_lea.vmem [#allocation6], 4
    %v678 = vld [vmem:[%s677] sm:$0x3]
    %v679 = vstv %s674
    %v680 = vmul.f32 %v679, %v517
    %v681 = vstv %s675
    %v682 = vmul.f32 %v681, %v671
    %v683 = vadd.f32 %v680, %v682
    %v684 = vstv %s676
    %v685 = vmul.f32 %v684, %v678
    %v686 = vadd.f32 %v683, %v685
    %v687 = vsel %vm172, %v169, %v686
    %s688 = scalar_lea.vmem [#allocation8], 4
    %v689 = vld [vmem:[%s688] ss:$8 sm:$0x3]
    %v691 = vlaneseq
    %v692 = vshrl.u32 %v691, 7
    %v693 = vsub.s32 0, %v692
    %v694 = vrot.slane %v689, %v693
    %v695 = vlaneseq
    %v696 = vshrl.u32 %v695, 7
    %v697 = vsub.s32 1, %v696
    %v698 = vrot.slane %v689, %v697
    %701 = vmatprep.subr.mxu0 %v105
    %702 = vmatpush1.msra.mxu0 %v104
    %703 = vmatprep.subr.mxu0 %v107
    %704 = vmatpush1.msra.mxu0 %v106
    %705 = vmatprep.subr.mxu0 %v109
    %706 = vmatpush1.msra.mxu0 %v108
    %707 = vmatprep.subr.mxu0 %v111
    %708 = vmatpush1.msra.mxu0 %v110
    %709 = vmatprep.subr.mxu0 %v113
    %710 = vmatpush1.msra.mxu0 %v112
    %711 = vmatprep.subr.mxu0 %v115
    %712 = vmatpush1.msra.mxu0 %v114
    %713 = vmatprep.subr.mxu0 %v117
    %714 = vmatpush1.msra.mxu0 %v116
    %715 = vmatprep.subr.mxu0 %v119
    %716 = vmatpush1.msra.mxu0 %v118
    %717 = vmatprep.subr.mxu0 %v121
    %718 = vmatpush1.msra.mxu0 %v120
    %719 = vmatprep.subr.mxu0 %v123
    %720 = vmatpush1.msra.mxu0 %v122
    %721 = vmatprep.subr.mxu0 %v125
    %722 = vmatpush1.msra.mxu0 %v124
    %723 = vmatprep.subr.mxu0 %v127
    %724 = vmatpush1.msra.mxu0 %v126
    %725 = vmatprep.subr.mxu0 %v129
    %726 = vmatpush1.msra.mxu0 %v128
    %727 = vmatprep.subr.mxu0 %v131
    %728 = vmatpush1.msra.mxu0 %v130
    %729 = vmatprep.subr.mxu0 %v133
    %730 = vmatpush1.msra.mxu0 %v132
    %731 = vmatprep.subr.mxu0 %v135
    %732 = vmatpush1.msra.mxu0 %v134
    %733 = vmatprep.subr.mxu0 0.0
    %734 = vmatpush1.msra.mxu0 0.0
    %735 = vmatprep.subr.mxu0 0.0
    %736 = vmatpush1.msra.mxu0 0.0
    %737 = vmatprep.subr.mxu0 0.0
    %738 = vmatpush1.msra.mxu0 0.0
    %739 = vmatprep.subr.mxu0 0.0
    %740 = vmatpush1.msra.mxu0 0.0
    %741 = vmatprep.subr.mxu0 0.0
    %742 = vmatpush1.msra.mxu0 0.0
    %743 = vmatprep.subr.mxu0 0.0
    %744 = vmatpush1.msra.mxu0 0.0
    %745 = vmatprep.subr.mxu0 0.0
    %746 = vmatpush1.msra.mxu0 0.0
    %747 = vmatprep.subr.mxu0 0.0
    %748 = vmatpush1.msra.mxu0 0.0
    %749 = vmatprep.subr.mxu0 0.0
    %750 = vmatpush1.msra.mxu0 0.0
    %751 = vmatprep.subr.mxu0 0.0
    %752 = vmatpush1.msra.mxu0 0.0
    %753 = vmatprep.subr.mxu0 0.0
    %754 = vmatpush1.msra.mxu0 0.0
    %755 = vmatprep.subr.mxu0 0.0
    %756 = vmatpush1.msra.mxu0 0.0
    %757 = vmatprep.subr.mxu0 0.0
    %758 = vmatpush1.msra.mxu0 0.0
    %759 = vmatprep.subr.mxu0 0.0
    %760 = vmatpush1.msra.mxu0 0.0
    %761 = vmatprep.subr.mxu0 0.0
    %762 = vmatpush1.msra.mxu0 0.0
    %763 = vmatprep.subr.mxu0 0.0
    %764 = vmatpush1.msra.mxu0 0.0
    %765 = vmatprep.mubr.f32.mxu0 0.0
    %766 = vmatmul.mubr.f32.gmra.mrb[0].mxu0 %v687
    %v767 = vpop.f32.mrb[0].mxu0
    %v768 = vadd.f32 %v694, %v767
    %v769 = vpop.f32.mrb[0].mxu0
    %v770 = vadd.f32 %v698, %v769
    %771 = vdwg.mxu0
    %v772 = vtanh.pop %v768
    %v773 = vtanh.pop %v770
    %774 = vmatprep.subr.mxu0 0.0
    %775 = vmatpush1.msra.mxu0 %v136
    %776 = vmatprep.subr.mxu0 0.0
    %777 = vmatpush1.msra.mxu0 %v137
    %778 = vmatprep.subr.mxu0 0.0
    %779 = vmatpush1.msra.mxu0 %v138
    %780 = vmatprep.subr.mxu0 0.0
    %781 = vmatpush1.msra.mxu0 %v139
    %782 = vmatprep.subr.mxu0 0.0
    %783 = vmatpush1.msra.mxu0 %v140
    %784 = vmatprep.subr.mxu0 0.0
    %785 = vmatpush1.msra.mxu0 %v141
    %786 = vmatprep.subr.mxu0 0.0
    %787 = vmatpush1.msra.mxu0 %v142
    %788 = vmatprep.subr.mxu0 0.0
    %789 = vmatpush1.msra.mxu0 %v143
    %790 = vmatprep.subr.mxu0 0.0
    %791 = vmatpush1.msra.mxu0 %v144
    %792 = vmatprep.subr.mxu0 0.0
    %793 = vmatpush1.msra.mxu0 %v145
    %794 = vmatprep.subr.mxu0 0.0
    %795 = vmatpush1.msra.mxu0 %v146
    %796 = vmatprep.subr.mxu0 0.0
    %797 = vmatpush1.msra.mxu0 %v147
    %798 = vmatprep.subr.mxu0 0.0
    %799 = vmatpush1.msra.mxu0 %v148
    %800 = vmatprep.subr.mxu0 0.0
    %801 = vmatpush1.msra.mxu0 %v149
    %802 = vmatprep.subr.mxu0 0.0
    %803 = vmatpush1.msra.mxu0 %v150
    %804 = vmatprep.subr.mxu0 0.0
    %805 = vmatpush1.msra.mxu0 %v151
    %806 = vmatprep.subr.mxu0 0.0
    %807 = vmatpush1.msra.mxu0 %v152
    %808 = vmatprep.subr.mxu0 0.0
    %809 = vmatpush1.msra.mxu0 %v153
    %810 = vmatprep.subr.mxu0 0.0
    %811 = vmatpush1.msra.mxu0 %v154
    %812 = vmatprep.subr.mxu0 0.0
    %813 = vmatpush1.msra.mxu0 %v155
    %814 = vmatprep.subr.mxu0 0.0
    %815 = vmatpush1.msra.mxu0 %v156
    %816 = vmatprep.subr.mxu0 0.0
    %817 = vmatpush1.msra.mxu0 %v157
    %818 = vmatprep.subr.mxu0 0.0
    %819 = vmatpush1.msra.mxu0 %v158
    %820 = vmatprep.subr.mxu0 0.0
    %821 = vmatpush1.msra.mxu0 %v159
    %822 = vmatprep.subr.mxu0 0.0
    %823 = vmatpush1.msra.mxu0 %v160
    %824 = vmatprep.subr.mxu0 0.0
    %825 = vmatpush1.msra.mxu0 %v161
    %826 = vmatprep.subr.mxu0 0.0
    %827 = vmatpush1.msra.mxu0 %v162
    %828 = vmatprep.subr.mxu0 0.0
    %829 = vmatpush1.msra.mxu0 %v163
    %830 = vmatprep.subr.mxu0 0.0
    %831 = vmatpush1.msra.mxu0 %v164
    %832 = vmatprep.subr.mxu0 0.0
    %833 = vmatpush1.msra.mxu0 %v165
    %834 = vmatprep.subr.mxu0 0.0
    %835 = vmatpush1.msra.mxu0 %v166
    %836 = vmatprep.subr.mxu0 0.0
    %837 = vmatpush1.msra.mxu0 %v167
    %838 = vmatprep.mubr.f32.mxu0 %v773
    %839 = vmatmul.mubr.f32.gmra.mrb[0].mxu0 %v772
    %v840 = vpop.f32.mrb[0].mxu0
    %v841 = vadd.f32 %v263, %v840
    %v842 = vpop.f32.mrb[0].mxu0
    %843 = vdwg.mxu0
    %s844 = sld [smem:[#allocation9 + $0x4]]
    %s845 = sld [smem:[#allocation9 + $0xc]]
    %s846 = sld [smem:[#allocation9 + $0x14]]
    %s847 = scalar_lea.vmem [#allocation6], 6
    %v848 = vld [vmem:[%s847] sm:$0x3]
    %v849 = vstv %s844
    %v850 = vmul.f32 %v849, %v687
    %v851 = vstv %s845
    %v852 = vmul.f32 %v851, %v841
    %v853 = vadd.f32 %v850, %v852
    %v854 = vstv %s846
    %v855 = vmul.f32 %v854, %v848
    %v856 = vadd.f32 %v853, %v855
    %v857 = vsel %vm172, %v169, %v856
    %s858 = scalar_lea.vmem [#allocation8], 3
    %v859 = vld [vmem:[%s858] ss:$8 sm:$0x3]
    %v861 = vlaneseq
    %v862 = vshrl.u32 %v861, 7
    %v863 = vsub.s32 0, %v862
    %v864 = vrot.slane %v859, %v863
    %v865 = vlaneseq
    %v866 = vshrl.u32 %v865, 7
    %v867 = vsub.s32 1, %v866
    %v868 = vrot.slane %v859, %v867
    %871 = vmatprep.subr.mxu0 %v105
    %872 = vmatpush1.msra.mxu0 %v104
    %873 = vmatprep.subr.mxu0 %v107
    %874 = vmatpush1.msra.mxu0 %v106
    %875 = vmatprep.subr.mxu0 %v109
    %876 = vmatpush1.msra.mxu0 %v108
    %877 = vmatprep.subr.mxu0 %v111
    %878 = vmatpush1.msra.mxu0 %v110
    %879 = vmatprep.subr.mxu0 %v113
    %880 = vmatpush1.msra.mxu0 %v112
    %881 = vmatprep.subr.mxu0 %v115
    %882 = vmatpush1.msra.mxu0 %v114
    %883 = vmatprep.subr.mxu0 %v117
    %884 = vmatpush1.msra.mxu0 %v116
    %885 = vmatprep.subr.mxu0 %v119
    %886 = vmatpush1.msra.mxu0 %v118
    %887 = vmatprep.subr.mxu0 %v121
    %888 = vmatpush1.msra.mxu0 %v120
    %889 = vmatprep.subr.mxu0 %v123
    %890 = vmatpush1.msra.mxu0 %v122
    %891 = vmatprep.subr.mxu0 %v125
    %892 = vmatpush1.msra.mxu0 %v124
    %893 = vmatprep.subr.mxu0 %v127
    %894 = vmatpush1.msra.mxu0 %v126
    %895 = vmatprep.subr.mxu0 %v129
    %896 = vmatpush1.msra.mxu0 %v128
    %897 = vmatprep.subr.mxu0 %v131
    %898 = vmatpush1.msra.mxu0 %v130
    %899 = vmatprep.subr.mxu0 %v133
    %900 = vmatpush1.msra.mxu0 %v132
    %901 = vmatprep.subr.mxu0 %v135
    %902 = vmatpush1.msra.mxu0 %v134
    %903 = vmatprep.subr.mxu0 0.0
    %904 = vmatpush1.msra.mxu0 0.0
    %905 = vmatprep.subr.mxu0 0.0
    %906 = vmatpush1.msra.mxu0 0.0
    %907 = vmatprep.subr.mxu0 0.0
    %908 = vmatpush1.msra.mxu0 0.0
    %909 = vmatprep.subr.mxu0 0.0
    %910 = vmatpush1.msra.mxu0 0.0
    %911 = vmatprep.subr.mxu0 0.0
    %912 = vmatpush1.msra.mxu0 0.0
    %913 = vmatprep.subr.mxu0 0.0
    %914 = vmatpush1.msra.mxu0 0.0
    %915 = vmatprep.subr.mxu0 0.0
    %916 = vmatpush1.msra.mxu0 0.0
    %917 = vmatprep.subr.mxu0 0.0
    %918 = vmatpush1.msra.mxu0 0.0
    %919 = vmatprep.subr.mxu0 0.0
    %920 = vmatpush1.msra.mxu0 0.0
    %921 = vmatprep.subr.mxu0 0.0
    %922 = vmatpush1.msra.mxu0 0.0
    %923 = vmatprep.subr.mxu0 0.0
    %924 = vmatpush1.msra.mxu0 0.0
    %925 = vmatprep.subr.mxu0 0.0
    %926 = vmatpush1.msra.mxu0 0.0
    %927 = vmatprep.subr.mxu0 0.0
    %928 = vmatpush1.msra.mxu0 0.0
    %929 = vmatprep.subr.mxu0 0.0
    %930 = vmatpush1.msra.mxu0 0.0
    %931 = vmatprep.subr.mxu0 0.0
    %932 = vmatpush1.msra.mxu0 0.0
    %933 = vmatprep.subr.mxu0 0.0
    %934 = vmatpush1.msra.mxu0 0.0
    %935 = vmatprep.mubr.f32.mxu0 0.0
    %936 = vmatmul.mubr.f32.gmra.mrb[0].mxu0 %v857
    %v937 = vpop.f32.mrb[0].mxu0
    %v938 = vadd.f32 %v864, %v937
    %v939 = vpop.f32.mrb[0].mxu0
    %v940 = vadd.f32 %v868, %v939
    %941 = vdwg.mxu0
    %v942 = vtanh.pop %v938
    %v943 = vtanh.pop %v940
    %944 = vmatprep.subr.mxu0 0.0
    %945 = vmatpush1.msra.mxu0 %v136
    %946 = vmatprep.subr.mxu0 0.0
    %947 = vmatpush1.msra.mxu0 %v137
    %948 = vmatprep.subr.mxu0 0.0
    %949 = vmatpush1.msra.mxu0 %v138
    %950 = vmatprep.subr.mxu0 0.0
    %951 = vmatpush1.msra.mxu0 %v139
    %952 = vmatprep.subr.mxu0 0.0
    %953 = vmatpush1.msra.mxu0 %v140
    %954 = vmatprep.subr.mxu0 0.0
    %955 = vmatpush1.msra.mxu0 %v141
    %956 = vmatprep.subr.mxu0 0.0
    %957 = vmatpush1.msra.mxu0 %v142
    %958 = vmatprep.subr.mxu0 0.0
    %959 = vmatpush1.msra.mxu0 %v143
    %960 = vmatprep.subr.mxu0 0.0
    %961 = vmatpush1.msra.mxu0 %v144
    %962 = vmatprep.subr.mxu0 0.0
    %963 = vmatpush1.msra.mxu0 %v145
    %964 = vmatprep.subr.mxu0 0.0
    %965 = vmatpush1.msra.mxu0 %v146
    %966 = vmatprep.subr.mxu0 0.0
    %967 = vmatpush1.msra.mxu0 %v147
    %968 = vmatprep.subr.mxu0 0.0
    %969 = vmatpush1.msra.mxu0 %v148
    %970 = vmatprep.subr.mxu0 0.0
    %971 = vmatpush1.msra.mxu0 %v149
    %972 = vmatprep.subr.mxu0 0.0
    %973 = vmatpush1.msra.mxu0 %v150
    %974 = vmatprep.subr.mxu0 0.0
    %975 = vmatpush1.msra.mxu0 %v151
    %976 = vmatprep.subr.mxu0 0.0
    %977 = vmatpush1.msra.mxu0 %v152
    %978 = vmatprep.subr.mxu0 0.0
    %979 = vmatpush1.msra.mxu0 %v153
    %980 = vmatprep.subr.mxu0 0.0
    %981 = vmatpush1.msra.mxu0 %v154
    %982 = vmatprep.subr.mxu0 0.0
    %983 = vmatpush1.msra.mxu0 %v155
    %984 = vmatprep.subr.mxu0 0.0
    %985 = vmatpush1.msra.mxu0 %v156
    %986 = vmatprep.subr.mxu0 0.0
    %987 = vmatpush1.msra.mxu0 %v157
    %988 = vmatprep.subr.mxu0 0.0
    %989 = vmatpush1.msra.mxu0 %v158
    %990 = vmatprep.subr.mxu0 0.0
    %991 = vmatpush1.msra.mxu0 %v159
    %992 = vmatprep.subr.mxu0 0.0
    %993 = vmatpush1.msra.mxu0 %v160
    %994 = vmatprep.subr.mxu0 0.0
    %995 = vmatpush1.msra.mxu0 %v161
    %996 = vmatprep.subr.mxu0 0.0
    %997 = vmatpush1.msra.mxu0 %v162
    %998 = vmatprep.subr.mxu0 0.0
    %999 = vmatpush1.msra.mxu0 %v163
    %1000 = vmatprep.subr.mxu0 0.0
    %1001 = vmatpush1.msra.mxu0 %v164
    %1002 = vmatprep.subr.mxu0 0.0
    %1003 = vmatpush1.msra.mxu0 %v165
    %1004 = vmatprep.subr.mxu0 0.0
    %1005 = vmatpush1.msra.mxu0 %v166
    %1006 = vmatprep.subr.mxu0 0.0
    %1007 = vmatpush1.msra.mxu0 %v167
    %1008 = vmatprep.mubr.f32.mxu0 %v943
    %1009 = vmatmul.mubr.f32.gmra.mrb[0].mxu0 %v942
    %v1010 = vpop.f32.mrb[0].mxu0
    %v1011 = vadd.f32 %v263, %v1010
    %v1012 = vpop.f32.mrb[0].mxu0
    %1013 = vdwg.mxu0
    %s1014 = sld [smem:[#allocation9 + $0x3]]
    %s1015 = sld [smem:[#allocation9 + $0xb]]
    %s1016 = sld [smem:[#allocation9 + $0x13]]
    %s1017 = scalar_lea.vmem [#allocation6], 8
    %v1018 = vld [vmem:[%s1017] sm:$0x3]
    %v1019 = vstv %s1014
    %v1020 = vmul.f32 %v1019, %v857
    %v1021 = vstv %s1015
    %v1022 = vmul.f32 %v1021, %v1011
    %v1023 = vadd.f32 %v1020, %v1022
    %v1024 = vstv %s1016
    %v1025 = vmul.f32 %v1024, %v1018
    %v1026 = vadd.f32 %v1023, %v1025
    %v1027 = vsel %vm172, %v169, %v1026
    %s1028 = scalar_lea.vmem [#allocation8], 2
    %v1029 = vld [vmem:[%s1028] ss:$8 sm:$0x3]
    %v1031 = vlaneseq
    %v1032 = vshrl.u32 %v1031, 7
    %v1033 = vsub.s32 0, %v1032
    %v1034 = vrot.slane %v1029, %v1033
    %v1035 = vlaneseq
    %v1036 = vshrl.u32 %v1035, 7
    %v1037 = vsub.s32 1, %v1036
    %v1038 = vrot.slane %v1029, %v1037
    %1041 = vmatprep.subr.mxu0 %v105
    %1042 = vmatpush1.msra.mxu0 %v104
    %1043 = vmatprep.subr.mxu0 %v107
    %1044 = vmatpush1.msra.mxu0 %v106
    %1045 = vmatprep.subr.mxu0 %v109
    %1046 = vmatpush1.msra.mxu0 %v108
    %1047 = vmatprep.subr.mxu0 %v111
    %1048 = vmatpush1.msra.mxu0 %v110
    %1049 = vmatprep.subr.mxu0 %v113
    %1050 = vmatpush1.msra.mxu0 %v112
    %1051 = vmatprep.subr.mxu0 %v115
    %1052 = vmatpush1.msra.mxu0 %v114
    %1053 = vmatprep.subr.mxu0 %v117
    %1054 = vmatpush1.msra.mxu0 %v116
    %1055 = vmatprep.subr.mxu0 %v119
    %1056 = vmatpush1.msra.mxu0 %v118
    %1057 = vmatprep.subr.mxu0 %v121
    %1058 = vmatpush1.msra.mxu0 %v120
    %1059 = vmatprep.subr.mxu0 %v123
    %1060 = vmatpush1.msra.mxu0 %v122
    %1061 = vmatprep.subr.mxu0 %v125
    %1062 = vmatpush1.msra.mxu0 %v124
    %1063 = vmatprep.subr.mxu0 %v127
    %1064 = vmatpush1.msra.mxu0 %v126
    %1065 = vmatprep.subr.mxu0 %v129
    %1066 = vmatpush1.msra.mxu0 %v128
    %1067 = vmatprep.subr.mxu0 %v131
    %1068 = vmatpush1.msra.mxu0 %v130
    %1069 = vmatprep.subr.mxu0 %v133
    %1070 = vmatpush1.msra.mxu0 %v132
    %1071 = vmatprep.subr.mxu0 %v135
    %1072 = vmatpush1.msra.mxu0 %v134
    %1073 = vmatprep.subr.mxu0 0.0
    %1074 = vmatpush1.msra.mxu0 0.0
    %1075 = vmatprep.subr.mxu0 0.0
    %1076 = vmatpush1.msra.mxu0 0.0
    %1077 = vmatprep.subr.mxu0 0.0
    %1078 = vmatpush1.msra.mxu0 0.0
    %1079 = vmatprep.subr.mxu0 0.0
    %1080 = vmatpush1.msra.mxu0 0.0
    %1081 = vmatprep.subr.mxu0 0.0
    %1082 = vmatpush1.msra.mxu0 0.0
    %1083 = vmatprep.subr.mxu0 0.0
    %1084 = vmatpush1.msra.mxu0 0.0
    %1085 = vmatprep.subr.mxu0 0.0
    %1086 = vmatpush1.msra.mxu0 0.0
    %1087 = vmatprep.subr.mxu0 0.0
    %1088 = vmatpush1.msra.mxu0 0.0
    %1089 = vmatprep.subr.mxu0 0.0
    %1090 = vmatpush1.msra.mxu0 0.0
    %1091 = vmatprep.subr.mxu0 0.0
    %1092 = vmatpush1.msra.mxu0 0.0
    %1093 = vmatprep.subr.mxu0 0.0
    %1094 = vmatpush1.msra.mxu0 0.0
    %1095 = vmatprep.subr.mxu0 0.0
    %1096 = vmatpush1.msra.mxu0 0.0
    %1097 = vmatprep.subr.mxu0 0.0
    %1098 = vmatpush1.msra.mxu0 0.0
    %1099 = vmatprep.subr.mxu0 0.0
    %1100 = vmatpush1.msra.mxu0 0.0
    %1101 = vmatprep.subr.mxu0 0.0
    %1102 = vmatpush1.msra.mxu0 0.0
    %1103 = vmatprep.subr.mxu0 0.0
    %1104 = vmatpush1.msra.mxu0 0.0
    %1105 = vmatprep.mubr.f32.mxu0 0.0
    %1106 = vmatmul.mubr.f32.gmra.mrb[0].mxu0 %v1027
    %v1107 = vpop.f32.mrb[0].mxu0
    %v1108 = vadd.f32 %v1034, %v1107
    %v1109 = vpop.f32.mrb[0].mxu0
    %v1110 = vadd.f32 %v1038, %v1109
    %1111 = vdwg.mxu0
    %v1112 = vtanh.pop %v1108
    %v1113 = vtanh.pop %v1110
    %1114 = vmatprep.subr.mxu0 0.0
    %1115 = vmatpush1.msra.mxu0 %v136
    %1116 = vmatprep.subr.mxu0 0.0
    %1117 = vmatpush1.msra.mxu0 %v137
    %1118 = vmatprep.subr.mxu0 0.0
    %1119 = vmatpush1.msra.mxu0 %v138
    %1120 = vmatprep.subr.mxu0 0.0
    %1121 = vmatpush1.msra.mxu0 %v139
    %1122 = vmatprep.subr.mxu0 0.0
    %1123 = vmatpush1.msra.mxu0 %v140
    %1124 = vmatprep.subr.mxu0 0.0
    %1125 = vmatpush1.msra.mxu0 %v141
    %1126 = vmatprep.subr.mxu0 0.0
    %1127 = vmatpush1.msra.mxu0 %v142
    %1128 = vmatprep.subr.mxu0 0.0
    %1129 = vmatpush1.msra.mxu0 %v143
    %1130 = vmatprep.subr.mxu0 0.0
    %1131 = vmatpush1.msra.mxu0 %v144
    %1132 = vmatprep.subr.mxu0 0.0
    %1133 = vmatpush1.msra.mxu0 %v145
    %1134 = vmatprep.subr.mxu0 0.0
    %1135 = vmatpush1.msra.mxu0 %v146
    %1136 = vmatprep.subr.mxu0 0.0
    %1137 = vmatpush1.msra.mxu0 %v147
    %1138 = vmatprep.subr.mxu0 0.0
    %1139 = vmatpush1.msra.mxu0 %v148
    %1140 = vmatprep.subr.mxu0 0.0
    %1141 = vmatpush1.msra.mxu0 %v149
    %1142 = vmatprep.subr.mxu0 0.0
    %1143 = vmatpush1.msra.mxu0 %v150
    %1144 = vmatprep.subr.mxu0 0.0
    %1145 = vmatpush1.msra.mxu0 %v151
    %1146 = vmatprep.subr.mxu0 0.0
    %1147 = vmatpush1.msra.mxu0 %v152
    %1148 = vmatprep.subr.mxu0 0.0
    %1149 = vmatpush1.msra.mxu0 %v153
    %1150 = vmatprep.subr.mxu0 0.0
    %1151 = vmatpush1.msra.mxu0 %v154
    %1152 = vmatprep.subr.mxu0 0.0
    %1153 = vmatpush1.msra.mxu0 %v155
    %1154 = vmatprep.subr.mxu0 0.0
    %1155 = vmatpush1.msra.mxu0 %v156
    %1156 = vmatprep.subr.mxu0 0.0
    %1157 = vmatpush1.msra.mxu0 %v157
    %1158 = vmatprep.subr.mxu0 0.0
    %1159 = vmatpush1.msra.mxu0 %v158
    %1160 = vmatprep.subr.mxu0 0.0
    %1161 = vmatpush1.msra.mxu0 %v159
    %1162 = vmatprep.subr.mxu0 0.0
    %1163 = vmatpush1.msra.mxu0 %v160
    %1164 = vmatprep.subr.mxu0 0.0
    %1165 = vmatpush1.msra.mxu0 %v161
    %1166 = vmatprep.subr.mxu0 0.0
    %1167 = vmatpush1.msra.mxu0 %v162
    %1168 = vmatprep.subr.mxu0 0.0
    %1169 = vmatpush1.msra.mxu0 %v163
    %1170 = vmatprep.subr.mxu0 0.0
    %1171 = vmatpush1.msra.mxu0 %v164
    %1172 = vmatprep.subr.mxu0 0.0
    %1173 = vmatpush1.msra.mxu0 %v165
    %1174 = vmatprep.subr.mxu0 0.0
    %1175 = vmatpush1.msra.mxu0 %v166
    %1176 = vmatprep.subr.mxu0 0.0
    %1177 = vmatpush1.msra.mxu0 %v167
    %1178 = vmatprep.mubr.f32.mxu0 %v1113
    %1179 = vmatmul.mubr.f32.gmra.mrb[0].mxu0 %v1112
    %v1180 = vpop.f32.mrb[0].mxu0
    %v1181 = vadd.f32 %v263, %v1180
    %v1182 = vpop.f32.mrb[0].mxu0
    %1183 = vdwg.mxu0
    %s1184 = sld [smem:[#allocation9 + $0x2]]
    %s1185 = sld [smem:[#allocation9 + $0xa]]
    %s1186 = sld [smem:[#allocation9 + $0x12]]
    %s1187 = scalar_lea.vmem [#allocation6], 10
    %v1188 = vld [vmem:[%s1187] sm:$0x3]
    %v1189 = vstv %s1184
    %v1190 = vmul.f32 %v1189, %v1027
    %v1191 = vstv %s1185
    %v1192 = vmul.f32 %v1191, %v1181
    %v1193 = vadd.f32 %v1190, %v1192
    %v1194 = vstv %s1186
    %v1195 = vmul.f32 %v1194, %v1188
    %v1196 = vadd.f32 %v1193, %v1195
    %v1197 = vsel %vm172, %v169, %v1196
    %s1198 = scalar_lea.vmem [#allocation8], 1
    %v1199 = vld [vmem:[%s1198] ss:$8 sm:$0x3]
    %v1201 = vlaneseq
    %v1202 = vshrl.u32 %v1201, 7
    %v1203 = vsub.s32 0, %v1202
    %v1204 = vrot.slane %v1199, %v1203
    %v1205 = vlaneseq
    %v1206 = vshrl.u32 %v1205, 7
    %v1207 = vsub.s32 1, %v1206
    %v1208 = vrot.slane %v1199, %v1207
    %1211 = vmatprep.subr.mxu0 %v105
    %1212 = vmatpush1.msra.mxu0 %v104
    %1213 = vmatprep.subr.mxu0 %v107
    %1214 = vmatpush1.msra.mxu0 %v106
    %1215 = vmatprep.subr.mxu0 %v109
    %1216 = vmatpush1.msra.mxu0 %v108
    %1217 = vmatprep.subr.mxu0 %v111
    %1218 = vmatpush1.msra.mxu0 %v110
    %1219 = vmatprep.subr.mxu0 %v113
    %1220 = vmatpush1.msra.mxu0 %v112
    %1221 = vmatprep.subr.mxu0 %v115
    %1222 = vmatpush1.msra.mxu0 %v114
    %1223 = vmatprep.subr.mxu0 %v117
    %1224 = vmatpush1.msra.mxu0 %v116
    %1225 = vmatprep.subr.mxu0 %v119
    %1226 = vmatpush1.msra.mxu0 %v118
    %1227 = vmatprep.subr.mxu0 %v121
    %1228 = vmatpush1.msra.mxu0 %v120
    %1229 = vmatprep.subr.mxu0 %v123
    %1230 = vmatpush1.msra.mxu0 %v122
    %1231 = vmatprep.subr.mxu0 %v125
    %1232 = vmatpush1.msra.mxu0 %v124
    %1233 = vmatprep.subr.mxu0 %v127
    %1234 = vmatpush1.msra.mxu0 %v126
    %1235 = vmatprep.subr.mxu0 %v129
    %1236 = vmatpush1.msra.mxu0 %v128
    %1237 = vmatprep.subr.mxu0 %v131
    %1238 = vmatpush1.msra.mxu0 %v130
    %1239 = vmatprep.subr.mxu0 %v133
    %1240 = vmatpush1.msra.mxu0 %v132
    %1241 = vmatprep.subr.mxu0 %v135
    %1242 = vmatpush1.msra.mxu0 %v134
    %1243 = vmatprep.subr.mxu0 0.0
    %1244 = vmatpush1.msra.mxu0 0.0
    %1245 = vmatprep.subr.mxu0 0.0
    %1246 = vmatpush1.msra.mxu0 0.0
    %1247 = vmatprep.subr.mxu0 0.0
    %1248 = vmatpush1.msra.mxu0 0.0
    %1249 = vmatprep.subr.mxu0 0.0
    %1250 = vmatpush1.msra.mxu0 0.0
    %1251 = vmatprep.subr.mxu0 0.0
    %1252 = vmatpush1.msra.mxu0 0.0
    %1253 = vmatprep.subr.mxu0 0.0
    %1254 = vmatpush1.msra.mxu0 0.0
    %1255 = vmatprep.subr.mxu0 0.0
    %1256 = vmatpush1.msra.mxu0 0.0
    %1257 = vmatprep.subr.mxu0 0.0
    %1258 = vmatpush1.msra.mxu0 0.0
    %1259 = vmatprep.subr.mxu0 0.0
    %1260 = vmatpush1.msra.mxu0 0.0
    %1261 = vmatprep.subr.mxu0 0.0
    %1262 = vmatpush1.msra.mxu0 0.0
    %1263 = vmatprep.subr.mxu0 0.0
    %1264 = vmatpush1.msra.mxu0 0.0
    %1265 = vmatprep.subr.mxu0 0.0
    %1266 = vmatpush1.msra.mxu0 0.0
    %1267 = vmatprep.subr.mxu0 0.0
    %1268 = vmatpush1.msra.mxu0 0.0
    %1269 = vmatprep.subr.mxu0 0.0
    %1270 = vmatpush1.msra.mxu0 0.0
    %1271 = vmatprep.subr.mxu0 0.0
    %1272 = vmatpush1.msra.mxu0 0.0
    %1273 = vmatprep.subr.mxu0 0.0
    %1274 = vmatpush1.msra.mxu0 0.0
    %1275 = vmatprep.mubr.f32.mxu0 0.0
    %1276 = vmatmul.mubr.f32.gmra.mrb[0].mxu0 %v1197
    %v1277 = vpop.f32.mrb[0].mxu0
    %v1278 = vadd.f32 %v1204, %v1277
    %v1279 = vpop.f32.mrb[0].mxu0
    %v1280 = vadd.f32 %v1208, %v1279
    %1281 = vdwg.mxu0
    %v1282 = vtanh.pop %v1278
    %v1283 = vtanh.pop %v1280
    %1284 = vmatprep.subr.mxu0 0.0
    %1285 = vmatpush1.msra.mxu0 %v136
    %1286 = vmatprep.subr.mxu0 0.0
    %1287 = vmatpush1.msra.mxu0 %v137
    %1288 = vmatprep.subr.mxu0 0.0
    %1289 = vmatpush1.msra.mxu0 %v138
    %1290 = vmatprep.subr.mxu0 0.0
    %1291 = vmatpush1.msra.mxu0 %v139
    %1292 = vmatprep.subr.mxu0 0.0
    %1293 = vmatpush1.msra.mxu0 %v140
    %1294 = vmatprep.subr.mxu0 0.0
    %1295 = vmatpush1.msra.mxu0 %v141
    %1296 = vmatprep.subr.mxu0 0.0
    %1297 = vmatpush1.msra.mxu0 %v142
    %1298 = vmatprep.subr.mxu0 0.0
    %1299 = vmatpush1.msra.mxu0 %v143
    %1300 = vmatprep.subr.mxu0 0.0
    %1301 = vmatpush1.msra.mxu0 %v144
    %1302 = vmatprep.subr.mxu0 0.0
    %1303 = vmatpush1.msra.mxu0 %v145
    %1304 = vmatprep.subr.mxu0 0.0
    %1305 = vmatpush1.msra.mxu0 %v146
    %1306 = vmatprep.subr.mxu0 0.0
    %1307 = vmatpush1.msra.mxu0 %v147
    %1308 = vmatprep.subr.mxu0 0.0
    %1309 = vmatpush1.msra.mxu0 %v148
    %1310 = vmatprep.subr.mxu0 0.0
    %1311 = vmatpush1.msra.mxu0 %v149
    %1312 = vmatprep.subr.mxu0 0.0
    %1313 = vmatpush1.msra.mxu0 %v150
    %1314 = vmatprep.subr.mxu0 0.0
    %1315 = vmatpush1.msra.mxu0 %v151
    %1316 = vmatprep.subr.mxu0 0.0
    %1317 = vmatpush1.msra.mxu0 %v152
    %1318 = vmatprep.subr.mxu0 0.0
    %1319 = vmatpush1.msra.mxu0 %v153
    %1320 = vmatprep.subr.mxu0 0.0
    %1321 = vmatpush1.msra.mxu0 %v154
    %1322 = vmatprep.subr.mxu0 0.0
    %1323 = vmatpush1.msra.mxu0 %v155
    %1324 = vmatprep.subr.mxu0 0.0
    %1325 = vmatpush1.msra.mxu0 %v156
    %1326 = vmatprep.subr.mxu0 0.0
    %1327 = vmatpush1.msra.mxu0 %v157
    %1328 = vmatprep.subr.mxu0 0.0
    %1329 = vmatpush1.msra.mxu0 %v158
    %1330 = vmatprep.subr.mxu0 0.0
    %1331 = vmatpush1.msra.mxu0 %v159
    %1332 = vmatprep.subr.mxu0 0.0
    %1333 = vmatpush1.msra.mxu0 %v160
    %1334 = vmatprep.subr.mxu0 0.0
    %1335 = vmatpush1.msra.mxu0 %v161
    %1336 = vmatprep.subr.mxu0 0.0
    %1337 = vmatpush1.msra.mxu0 %v162
    %1338 = vmatprep.subr.mxu0 0.0
    %1339 = vmatpush1.msra.mxu0 %v163
    %1340 = vmatprep.subr.mxu0 0.0
    %1341 = vmatpush1.msra.mxu0 %v164
    %1342 = vmatprep.subr.mxu0 0.0
    %1343 = vmatpush1.msra.mxu0 %v165
    %1344 = vmatprep.subr.mxu0 0.0
    %1345 = vmatpush1.msra.mxu0 %v166
    %1346 = vmatprep.subr.mxu0 0.0
    %1347 = vmatpush1.msra.mxu0 %v167
    %1348 = vmatprep.mubr.f32.mxu0 %v1283
    %1349 = vmatmul.mubr.f32.gmra.mrb[0].mxu0 %v1282
    %v1350 = vpop.f32.mrb[0].mxu0
    %v1351 = vadd.f32 %v263, %v1350
    %v1352 = vpop.f32.mrb[0].mxu0
    %1353 = vdwg.mxu0
    %s1354 = sld [smem:[#allocation9 + $0x1]]
    %s1355 = sld [smem:[#allocation9 + $0x9]]
    %s1356 = sld [smem:[#allocation9 + $0x11]]
    %s1357 = scalar_lea.vmem [#allocation6], 12
    %v1358 = vld [vmem:[%s1357] sm:$0x3]
    %v1359 = vstv %s1354
    %v1360 = vmul.f32 %v1359, %v1197
    %v1361 = vstv %s1355
    %v1362 = vmul.f32 %v1361, %v1351
    %v1363 = vadd.f32 %v1360, %v1362
    %v1364 = vstv %s1356
    %v1365 = vmul.f32 %v1364, %v1358
    %v1366 = vadd.f32 %v1363, %v1365
    %v1367 = vsel %vm172, %v169, %v1366
    %v1368 = vld [vmem:[#allocation8] ss:$8 sm:$0x3]
    %v1370 = vlaneseq
    %v1371 = vshrl.u32 %v1370, 7
    %v1372 = vsub.s32 0, %v1371
    %v1373 = vrot.slane %v1368, %v1372
    %v1374 = vlaneseq
    %v1375 = vshrl.u32 %v1374, 7
    %v1376 = vsub.s32 1, %v1375
    %v1377 = vrot.slane %v1368, %v1376
    %1380 = vmatprep.subr.mxu0 %v105
    %1381 = vmatpush1.msra.mxu0 %v104
    %1382 = vmatprep.subr.mxu0 %v107
    %1383 = vmatpush1.msra.mxu0 %v106
    %1384 = vmatprep.subr.mxu0 %v109
    %1385 = vmatpush1.msra.mxu0 %v108
    %1386 = vmatprep.subr.mxu0 %v111
    %1387 = vmatpush1.msra.mxu0 %v110
    %1388 = vmatprep.subr.mxu0 %v113
    %1389 = vmatpush1.msra.mxu0 %v112
    %1390 = vmatprep.subr.mxu0 %v115
    %1391 = vmatpush1.msra.mxu0 %v114
    %1392 = vmatprep.subr.mxu0 %v117
    %1393 = vmatpush1.msra.mxu0 %v116
    %1394 = vmatprep.subr.mxu0 %v119
    %1395 = vmatpush1.msra.mxu0 %v118
    %1396 = vmatprep.subr.mxu0 %v121
    %1397 = vmatpush1.msra.mxu0 %v120
    %1398 = vmatprep.subr.mxu0 %v123
    %1399 = vmatpush1.msra.mxu0 %v122
    %1400 = vmatprep.subr.mxu0 %v125
    %1401 = vmatpush1.msra.mxu0 %v124
    %1402 = vmatprep.subr.mxu0 %v127
    %1403 = vmatpush1.msra.mxu0 %v126
    %1404 = vmatprep.subr.mxu0 %v129
    %1405 = vmatpush1.msra.mxu0 %v128
    %1406 = vmatprep.subr.mxu0 %v131
    %1407 = vmatpush1.msra.mxu0 %v130
    %1408 = vmatprep.subr.mxu0 %v133
    %1409 = vmatpush1.msra.mxu0 %v132
    %1410 = vmatprep.subr.mxu0 %v135
    %1411 = vmatpush1.msra.mxu0 %v134
    %1412 = vmatprep.subr.mxu0 0.0
    %1413 = vmatpush1.msra.mxu0 0.0
    %1414 = vmatprep.subr.mxu0 0.0
    %1415 = vmatpush1.msra.mxu0 0.0
    %1416 = vmatprep.subr.mxu0 0.0
    %1417 = vmatpush1.msra.mxu0 0.0
    %1418 = vmatprep.subr.mxu0 0.0
    %1419 = vmatpush1.msra.mxu0 0.0
    %1420 = vmatprep.subr.mxu0 0.0
    %1421 = vmatpush1.msra.mxu0 0.0
    %1422 = vmatprep.subr.mxu0 0.0
    %1423 = vmatpush1.msra.mxu0 0.0
    %1424 = vmatprep.subr.mxu0 0.0
    %1425 = vmatpush1.msra.mxu0 0.0
    %1426 = vmatprep.subr.mxu0 0.0
    %1427 = vmatpush1.msra.mxu0 0.0
    %1428 = vmatprep.subr.mxu0 0.0
    %1429 = vmatpush1.msra.mxu0 0.0
    %1430 = vmatprep.subr.mxu0 0.0
    %1431 = vmatpush1.msra.mxu0 0.0
    %1432 = vmatprep.subr.mxu0 0.0
    %1433 = vmatpush1.msra.mxu0 0.0
    %1434 = vmatprep.subr.mxu0 0.0
    %1435 = vmatpush1.msra.mxu0 0.0
    %1436 = vmatprep.subr.mxu0 0.0
    %1437 = vmatpush1.msra.mxu0 0.0
    %1438 = vmatprep.subr.mxu0 0.0
    %1439 = vmatpush1.msra.mxu0 0.0
    %1440 = vmatprep.subr.mxu0 0.0
    %1441 = vmatpush1.msra.mxu0 0.0
    %1442 = vmatprep.subr.mxu0 0.0
    %1443 = vmatpush1.msra.mxu0 0.0
    %1444 = vmatprep.mubr.f32.mxu0 0.0
    %1445 = vmatmul.mubr.f32.gmra.mrb[0].mxu0 %v1367
    %v1446 = vpop.f32.mrb[0].mxu0
    %v1447 = vadd.f32 %v1373, %v1446
    %v1448 = vpop.f32.mrb[0].mxu0
    %v1449 = vadd.f32 %v1377, %v1448
    %1450 = vdwg.mxu0
    %v1451 = vtanh.pop %v1447
    %v1452 = vtanh.pop %v1449
    %1453 = vmatprep.subr.mxu0 0.0
    %1454 = vmatpush1.msra.mxu0 %v136
    %1455 = vmatprep.subr.mxu0 0.0
    %1456 = vmatpush1.msra.mxu0 %v137
    %1457 = vmatprep.subr.mxu0 0.0
    %1458 = vmatpush1.msra.mxu0 %v138
    %1459 = vmatprep.subr.mxu0 0.0
    %1460 = vmatpush1.msra.mxu0 %v139
    %1461 = vmatprep.subr.mxu0 0.0
    %1462 = vmatpush1.msra.mxu0 %v140
    %1463 = vmatprep.subr.mxu0 0.0
    %1464 = vmatpush1.msra.mxu0 %v141
    %1465 = vmatprep.subr.mxu0 0.0
    %1466 = vmatpush1.msra.mxu0 %v142
    %1467 = vmatprep.subr.mxu0 0.0
    %1468 = vmatpush1.msra.mxu0 %v143
    %1469 = vmatprep.subr.mxu0 0.0
    %1470 = vmatpush1.msra.mxu0 %v144
    %1471 = vmatprep.subr.mxu0 0.0
    %1472 = vmatpush1.msra.mxu0 %v145
    %1473 = vmatprep.subr.mxu0 0.0
    %1474 = vmatpush1.msra.mxu0 %v146
    %1475 = vmatprep.subr.mxu0 0.0
    %1476 = vmatpush1.msra.mxu0 %v147
    %1477 = vmatprep.subr.mxu0 0.0
    %1478 = vmatpush1.msra.mxu0 %v148
    %1479 = vmatprep.subr.mxu0 0.0
    %1480 = vmatpush1.msra.mxu0 %v149
    %1481 = vmatprep.subr.mxu0 0.0
    %1482 = vmatpush1.msra.mxu0 %v150
    %1483 = vmatprep.subr.mxu0 0.0
    %1484 = vmatpush1.msra.mxu0 %v151
    %1485 = vmatprep.subr.mxu0 0.0
    %1486 = vmatpush1.msra.mxu0 %v152
    %1487 = vmatprep.subr.mxu0 0.0
    %1488 = vmatpush1.msra.mxu0 %v153
    %1489 = vmatprep.subr.mxu0 0.0
    %1490 = vmatpush1.msra.mxu0 %v154
    %1491 = vmatprep.subr.mxu0 0.0
    %1492 = vmatpush1.msra.mxu0 %v155
    %1493 = vmatprep.subr.mxu0 0.0
    %1494 = vmatpush1.msra.mxu0 %v156
    %1495 = vmatprep.subr.mxu0 0.0
    %1496 = vmatpush1.msra.mxu0 %v157
    %1497 = vmatprep.subr.mxu0 0.0
    %1498 = vmatpush1.msra.mxu0 %v158
    %1499 = vmatprep.subr.mxu0 0.0
    %1500 = vmatpush1.msra.mxu0 %v159
    %1501 = vmatprep.subr.mxu0 0.0
    %1502 = vmatpush1.msra.mxu0 %v160
    %1503 = vmatprep.subr.mxu0 0.0
    %1504 = vmatpush1.msra.mxu0 %v161
    %1505 = vmatprep.subr.mxu0 0.0
    %1506 = vmatpush1.msra.mxu0 %v162
    %1507 = vmatprep.subr.mxu0 0.0
    %1508 = vmatpush1.msra.mxu0 %v163
    %1509 = vmatprep.subr.mxu0 0.0
    %1510 = vmatpush1.msra.mxu0 %v164
    %1511 = vmatprep.subr.mxu0 0.0
    %1512 = vmatpush1.msra.mxu0 %v165
    %1513 = vmatprep.subr.mxu0 0.0
    %1514 = vmatpush1.msra.mxu0 %v166
    %1515 = vmatprep.subr.mxu0 0.0
    %1516 = vmatpush1.msra.mxu0 %v167
    %1517 = vmatprep.mubr.f32.mxu0 %v1452
    %1518 = vmatmul.mubr.f32.gmra.mrb[0].mxu0 %v1451
    %v1519 = vpop.f32.mrb[0].mxu0
    %v1520 = vadd.f32 %v263, %v1519
    %v1521 = vpop.f32.mrb[0].mxu0
    %1522 = vdwg.mxu0
    %s1523 = sld [smem:[#allocation9]]
    %s1524 = sld [smem:[#allocation9 + $0x8]]
    %s1525 = sld [smem:[#allocation9 + $0x10]]
    %s1526 = scalar_lea.vmem [#allocation6], 14
    %v1527 = vld [vmem:[%s1526] sm:$0x3]
    %v1528 = vstv %s1523
    %v1529 = vmul.f32 %v1528, %v1367
    %v1530 = vstv %s1524
    %v1531 = vmul.f32 %v1530, %v1520
    %v1532 = vadd.f32 %v1529, %v1531
    %v1533 = vstv %s1525
    %v1534 = vmul.f32 %v1533, %v1527
    %v1535 = vadd.f32 %v1532, %v1534
    %v1536 = vsel %vm172, %v169, %v1535
    %1537 = vst [vmem:[#allocation13] sm:$0x3] %v1536
    // Predicated region
    $region54: #{tpu_custom_call.1} parent=1 // pred_check
      _
    $region55: #{tpu_custom_call.1} parent=1 // pred_check_branch
      %1539 = sbr.rel (0) target = $region57
    $region56: #{tpu_custom_call.1} parent=1 // pred_region
      %s1541 = ssub.s32 32, 32
      %1542 = vsyncadd [#allocation4], %s1541
      %s1544 = sshll.u32 [#allocation13], 4
      %s1545 = int_to_ptr.vmem [resolvable:$true] %s1544
      %1547 = dma.vmem_to_hbm [thread:$0]  %s1545, 32, %s7, [#allocation4]
    $region57: #{tpu_custom_call.1} parent=1 // pred_fallthru
      _
    // Predicated region
    $region58: #{tpu_custom_call.1} parent=1 // pred_check
      _
    $region59: #{tpu_custom_call.1} parent=1 // pred_check_branch
      %1549 = sbr.rel (0) target = $region61
    $region60: #{tpu_custom_call.1} parent=1 // pred_region
      %1550 = dma.done [#allocation4], 32
    $region61: #{tpu_custom_call.1} parent=1 // pred_fallthru
      _
    %1551 = vsyncpa [#allocation3], 1
    %1552 = vsyncpa [#allocation7], 1
    %1553 = vsyncpa [#allocation11], 1
    %1554 = vsyncpa [#allocation4], 1
    %1555 = vsyncpa [#allocation5], 1

</llo_original>
